<compile_context>
chip_gen: v5e
topology: v5e:2x2
jax: 0.10.0
libtpu: 0.0.40
codegen_flags: <defaults>
</compile_context>

<pallas_src>
import functools
import numpy as np
import jax
import jax.numpy as jnp
from jax.experimental import pallas as pl
from jax.experimental.pallas import tpu as pltpu

SIZES = (1, 2, 3, 6)


def _round_up(n, m):
    return ((n + m - 1) // m) * m


def adaptive_pool_assignment(H, W, size):
    """nn.AdaptiveAvgPool2d((size,size)) as an exact-1.0 assignment matrix
    (size*size, H*W) plus a per-cell 1/area vector (applied later in f32)."""
    M = np.zeros((size * size, H * W), np.float32)
    inv = np.zeros((size * size,), np.float32)
    for i in range(size):
        h0 = (i * H) // size
        h1 = -((-(i + 1) * H) // size)
        for j in range(size):
            w0 = (j * W) // size
            w1 = -((-(j + 1) * W) // size)
            inv[i * size + j] = 1.0 / float((h1 - h0) * (w1 - w0))
            for y in range(h0, h1):
                for x in range(w0, w1):
                    M[i * size + j, y * W + x] = 1.0
    return M, inv


def bilinear_upsample_matrix(H, W, size):
    """(H*W, size*size) matrix for F.interpolate(size=(H,W), mode='bilinear',
    align_corners=False) applied to a (size, size) map."""
    M = np.zeros((H * W, size * size), np.float32)
    sh = size / H
    sw = size / W
    for y in range(H):
        sy = max((y + 0.5) * sh - 0.5, 0.0)
        y0 = min(int(np.floor(sy)), size - 1)
        y1 = min(y0 + 1, size - 1)
        ly1 = sy - y0
        ly0 = 1.0 - ly1
        for x in range(W):
            sx = max((x + 0.5) * sw - 0.5, 0.0)
            x0 = min(int(np.floor(sx)), size - 1)
            x1 = min(x0 + 1, size - 1)
            lx1 = sx - x0
            lx0 = 1.0 - lx1
            r = y * W + x
            M[r, y0 * size + x0] += ly0 * lx0
            M[r, y0 * size + x1] += ly0 * lx1
            M[r, y1 * size + x0] += ly1 * lx0
            M[r, y1 * size + x1] += ly1 * lx1
    return M


@functools.lru_cache(maxsize=None)
def _build_ppm_matrices(H, W, sizes, HW_pad, total_pad):
    """Cached constant matrices (channels-first layout).

    poolmT   (HW_pad, total_pad): exact-1.0 pooling assignment (transposed).
    area_inv (1, total_pad):      f32 1/area per pooled cell (0 on padding).
    upmT     (total_pad, HW_pad): merged bilinear upsample matrix (transposed).
    Padding rows/columns are zero, so padded HW pixels / pooled slots never
    contribute to the result.
    """
    HW = H * W
    offs, off = [], 0
    for s in sizes:
        offs.append(off)
        off += s * s
    assert off <= total_pad
    poolmT = np.zeros((HW_pad, total_pad), np.float32)
    area_inv = np.zeros((1, total_pad), np.float32)
    upmT = np.zeros((total_pad, HW_pad), np.float32)
    for s, o in zip(sizes, offs):
        P, inv = adaptive_pool_assignment(H, W, s)
        poolmT[:HW, o:o + s * s] = P.T
        area_inv[0, o:o + s * s] = inv
        upmT[o:o + s * s, :HW] = bilinear_upsample_matrix(H, W, s).T
    return tuple(offs), poolmT, area_inv, upmT


@functools.lru_cache(maxsize=None)
def _build_stage_mask(sizes, channels, total_pad):
    """(n*channels, total_pad) block-diagonal 0/1 mask: stage si's conv rows
    are active only on stage si's pooled columns; padded columns stay zero."""
    n = len(sizes)
    mask = np.zeros((n * channels, total_pad), np.float32)
    off = 0
    for si, s in enumerate(sizes):
        mask[si * channels:(si + 1) * channels, off:off + s * s] = 1.0
        off += s * s
    return mask


# ---------------------------- VMEM accounting ----------------------------

def _vmem_capacity_bytes():
    try:
        return int(pltpu.get_tpu_info().vmem_capacity_bytes)
    except Exception:
        return 64 * 1024 * 1024   # conservative (v7x-sized) fallback


def _vmem_needs(tile_hw, Cin, total_pad, nch, out_bytes):
    """Per-step VMEM estimate (bytes) for kernels A / B: double-buffered
    HW-varying tiles, worst-case double-buffered resident weight blocks,
    f32 accumulator and the output block."""
    need_a = (2 * (Cin * tile_hw * 2 + tile_hw * total_pad * 2)       # feats, poolT
              + 2 * (nch * Cin * 2 + nch * 4 + nch * total_pad * 4    # ws, bias, mask
                     + Cin * nch * 2 + total_pad * 4)                 # wbp, area_inv
              + Cin * total_pad * 4                                   # f32 accumulator
              + 2 * Cin * total_pad * 2)                              # contrib out
    need_b = (2 * (Cin * tile_hw * 2 + total_pad * tile_hw * 2        # feats, upT
                   + Cin * tile_hw * out_bytes)                       # out tile
              + 2 * (Cin * total_pad * 2 + Cin * Cin * 2 + Cin * 4))  # contrib, wbf, b
    return need_a, need_b


def _vmem_limit_bytes(need, cap):
    return int(min(max(int(1.5 * need) + (4 << 20), 32 << 20), int(cap * 0.9)))


def _pick_tile_hw(HW, Cin, total_pad, nch, out_bytes, cap):
    """Largest HW tile (multiple of 128) whose working set — including the
    resident weight blocks — fits this generation's VMEM."""
    budget = int(cap * 0.7)
    hw128 = _round_up(HW, 128)
    for cand in (2048, 1024, 512, 256, 128):
        if cand > hw128:
            continue
        na, nb = _vmem_needs(cand, Cin, total_pad, nch, out_bytes)
        if max(na, nb) <= budget:
            return cand
    return 128


def _full_spec(arr):
    nd = arr.ndim
    return pl.BlockSpec(arr.shape, lambda *_, nd=nd: (0,) * nd)


# ------------------------------- kernels ---------------------------------

def _pool_stage_kernel(feats_ref, poolmT_ref, area_inv_ref, wsa_ref, bsa_ref,
                       mask_ref, wbp_ref, contrib_ref, pooled_acc):
    """Pre-pass.  Grid=(B, HW tiles); HW is an 'arbitrary' reduction axis.

    Accumulates the exact-1.0 pooling matmul for all stages; on the last HW
    tile: f32 1/area scale, all stage 1x1 convs as one batched matmul + bias
    + ReLU, block-diagonal mask, then fold of the bottleneck prior weight
    groups -> contrib (Cin, total_pad)."""
    k = pl.program_id(1)

    @pl.when(k == 0)
    def _():
        pooled_acc[...] = jnp.zeros_like(pooled_acc)

    pooled_acc[...] += jnp.dot(feats_ref[0], poolmT_ref[...],
                               preferred_element_type=jnp.float32)

    @pl.when(k == pl.num_programs(1) - 1)
    def _():
        pooled = (pooled_acc[...] * area_inv_ref[...]).astype(jnp.bfloat16)
        s = jnp.dot(wsa_ref[...], pooled, preferred_element_type=jnp.float32)
        s = jnp.maximum(s + bsa_ref[...], 0.0)
        s = (s * mask_ref[...]).astype(jnp.bfloat16)
        contrib_ref[0] = jnp.dot(
            wbp_ref[...], s, preferred_element_type=jnp.float32
        ).astype(contrib_ref.dtype)


def _bottleneck_kernel(feats_ref, upmT_ref, contrib_ref, wbf_ref, bb_ref, out_ref):
    """Main pass (already NCHW): relu(Wb_feats @ feats + contrib @ UpT + b)."""
    acc = jnp.dot(wbf_ref[...], feats_ref[0], preferred_element_type=jnp.float32)
    acc += jnp.dot(contrib_ref[0], upmT_ref[...], preferred_element_type=jnp.float32)
    out_ref[0] = jnp.maximum(acc + bb_ref[...], 0.0).astype(out_ref.dtype)


# ------------------------------- wrapper ---------------------------------

def pyramid_pooling_module(x_nchw, params, sizes=SIZES, tile_hw=None,
                           out_dtype=None):
    B, Cin, H, W = x_nchw.shape
    HW = H * W
    n = len(sizes)
    channels = params['stage_w'].shape[1]          # (n, channels, Cin)
    nch = n * channels
    if out_dtype is None:
        out_dtype = x_nchw.dtype
    out_bytes = np.dtype(out_dtype).itemsize

    total_pad = max(128, _round_up(sum(s * s for s in sizes), 128))

    cap = _vmem_capacity_bytes()
    if tile_hw is None:
        tile_hw = _pick_tile_hw(HW, Cin, total_pad, nch, out_bytes, cap)
    assert tile_hw % 128 == 0, "tile_hw must be a multiple of 128"
    HW_pad = _round_up(HW, tile_hw)
    n_hw = HW_pad // tile_hw
    need_a, need_b = _vmem_needs(tile_hw, Cin, total_pad, nch, out_bytes)

    _, poolmT_np, area_inv_np, upmT_np = _build_ppm_matrices(
        H, W, tuple(sizes), HW_pad, total_pad)
    mask_np = _build_stage_mask(tuple(sizes), channels, total_pad)

    bf16 = jnp.bfloat16
    f32 = jnp.float32

    # Channels-first: a pure reshape — no transpose; the HW zero-pad and the
    # bf16 cast fuse into a single XLA pass.
    feats = x_nchw.reshape(B, Cin, HW)
    if HW_pad != HW:
        feats = jnp.pad(feats, ((0, 0), (0, 0), (0, HW_pad - HW)))
    feats = feats.astype(bf16)

    poolmT = jnp.asarray(poolmT_np, dtype=bf16)     # exact 1.0 entries
    area_inv = jnp.asarray(area_inv_np, dtype=f32)
    upmT = jnp.asarray(upmT_np, dtype=bf16)
    mask = jnp.asarray(mask_np, dtype=f32)

    wsa = params['stage_w'].reshape(nch, Cin).astype(bf16)   # all stage convs
    bsa = params['stage_b'].reshape(nch, 1).astype(f32)
    wb = params['bottleneck_w']                              # (Cin, nch + Cin)
    wbp = wb[:, :nch].astype(bf16)                           # prior groups
    wbf = wb[:, nch:].astype(bf16)                           # feats group
    bb = params['bottleneck_b'].reshape(Cin, 1).astype(f32)

    # ---- Kernel A: pooling reduction + batched stage convs + prior fold ----
    contrib = pl.pallas_call(
        _pool_stage_kernel,
        out_shape=jax.ShapeDtypeStruct((B, Cin, total_pad), bf16),
        grid_spec=pltpu.PrefetchScalarGridSpec(
            num_scalar_prefetch=0,
            grid=(B, n_hw),
            in_specs=[
                pl.BlockSpec((1, Cin, tile_hw), lambda b, k: (b, 0, k)),
                pl.BlockSpec((tile_hw, total_pad), lambda b, k: (k, 0)),
                _full_spec(area_inv), _full_spec(wsa), _full_spec(bsa),
                _full_spec(mask), _full_spec(wbp),
            ],
            out_specs=pl.BlockSpec((1, Cin, total_pad), lambda b, k: (b, 0, 0)),
            scratch_shapes=[pltpu.VMEM((Cin, total_pad), f32)]),
        compiler_params=pltpu.CompilerParams(
            dimension_semantics=("parallel", "arbitrary"),
            vmem_limit_bytes=_vmem_limit_bytes(need_a, cap)),
        cost_estimate=pl.CostEstimate(
            flops=2 * B * Cin * HW_pad * total_pad
                  + 2 * B * nch * Cin * total_pad
                  + 2 * B * Cin * nch * total_pad,
            transcendentals=0,
            bytes_accessed=B * Cin * HW_pad * 2 + B * HW_pad * total_pad * 2
                           + 2 * nch * Cin * 2 + nch * total_pad * 4
                           + B * Cin * total_pad * 2),
    )(feats, poolmT, area_inv, wsa, bsa, mask, wbp)

    # ---- Kernel B: HW-tiled bottleneck, emits NCHW directly ----
    # Grid is (hw, b) so the upsample-matrix block is reused across the batch.
    out = pl.pallas_call(
        _bottleneck_kernel,
        out_shape=jax.ShapeDtypeStruct((B, Cin, HW_pad), out_dtype),
        grid_spec=pltpu.PrefetchScalarGridSpec(
            num_scalar_prefetch=0,
            grid=(n_hw, B),
            in_specs=[
                pl.BlockSpec((1, Cin, tile_hw), lambda h, b: (b, 0, h)),
                pl.BlockSpec((total_pad, tile_hw), lambda h, b: (0, h)),
                pl.BlockSpec((1, Cin, total_pad), lambda h, b: (b, 0, 0)),
                _full_spec(wbf), _full_spec(bb),
            ],
            out_specs=pl.BlockSpec((1, Cin, tile_hw), lambda h, b: (b, 0, h))),
        compiler_params=pltpu.CompilerParams(
            dimension_semantics=("parallel", "parallel"),
            vmem_limit_bytes=_vmem_limit_bytes(need_b, cap)),
        cost_estimate=pl.CostEstimate(
            flops=2 * B * HW_pad * Cin * (Cin + total_pad),
            transcendentals=0,
            bytes_accessed=B * Cin * HW_pad * (2 + out_bytes)
                           + HW_pad * total_pad * 2
                           + B * n_hw * Cin * total_pad * 2 + Cin * Cin * 2),
    )(feats, upmT, contrib, wbf, bb)

    if HW_pad != HW:
        out = out[:, :, :HW]
    return out.reshape(B, Cin, H, W)


# --------------------------- params / reference ---------------------------

def init_params(key, in_channels, channels, sizes=SIZES):
    """Deterministic synthetic params mirroring the PyTorch module's shapes
    (1x1 conv weights stored as (out, in) matrices, channels-first)."""
    n = len(sizes)
    k0, k1, k2, k3 = jax.random.split(key, 4)
    ctot = in_channels + n * channels
    return {
        'stage_w': jax.random.normal(k0, (n, channels, in_channels), jnp.float32)
                   / np.sqrt(in_channels),
        'stage_b': jax.random.normal(k1, (n, channels), jnp.float32) * 0.1,
        'bottleneck_w': jax.random.normal(k2, (in_channels, ctot), jnp.float32)
                        / np.sqrt(ctot),
        'bottleneck_b': jax.random.normal(k3, (in_channels,), jnp.float32) * 0.1,
    }


def reference(x_nchw, params, sizes=SIZES):
    """Pure-JAX reference mirroring the PyTorch forward (adaptive avg-pool ->
    1x1 conv + ReLU -> bilinear upsample -> concat -> 1x1 conv + ReLU),
    channels-first, with the same bf16 quantization of feats / weights as the
    kernel (intermediates kept in f32)."""
    B, Cin, H, W = x_nchw.shape
    HW = H * W
    bf16, f32 = jnp.bfloat16, jnp.float32
    feats = x_nchw.reshape(B, Cin, HW).astype(bf16).astype(f32)
    priors = []
    for si, s in enumerate(sizes):
        P, inv = adaptive_pool_assignment(H, W, s)
        poolm = jnp.asarray(P * inv[:, None], dtype=f32)         # (s*s, HW)
        upm = jnp.asarray(bilinear_upsample_matrix(H, W, s), dtype=f32)
        pooled = jnp.einsum('ph,bch->bcp', poolm, feats)
        w = params['stage_w'][si].astype(bf16).astype(f32)
        b = params['stage_b'][si]
        stage = jax.nn.relu(jnp.einsum('dc,bcp->bdp', w, pooled)
                            + b[None, :, None])
        priors.append(jnp.einsum('hp,bdp->bdh', upm, stage))
    xcat = jnp.concatenate(priors + [feats], axis=1)
    wb = params['bottleneck_w'].astype(bf16).astype(f32)
    out = jax.nn.relu(jnp.einsum('ct,bth->bch', wb, xcat)
                      + params['bottleneck_b'][None, :, None])
    return out.reshape(B, Cin, H, W)


if __name__ == "__main__":
    key = jax.random.PRNGKey(0)
    kx, kp = jax.random.split(key)

    # Small but lane/sublane-dense demo shapes (production: Cin=2048, ch=512).
    B, Cin, H, W = 2, 128, 16, 16
    channels = 128

    x = jax.random.normal(kx, (B, Cin, H, W), jnp.float32)
    params = init_params(kp, Cin, channels)

    ref = reference(x, params)

    # 1) Auto-picked tile (VMEM-budget-driven), f32 output.
    out = jax.block_until_ready(pyramid_pooling_module(x, params))
    assert out.shape == (B, Cin, H, W) and out.dtype == x.dtype
    np.testing.assert_allclose(np.asarray(out), np.asarray(ref),
                               rtol=2e-2, atol=2e-2)

    # 2) Forced 128-wide tile + bf16 output: exercises the multi-step pooling
    #    reduction and the reduced-writeback path.
    out2 = pyramid_pooling_module(x, params, tile_hw=128, out_dtype=jnp.bfloat16)
    out2 = jax.block_until_ready(out2)
    assert out2.dtype == jnp.bfloat16
    np.testing.assert_allclose(np.asarray(out2.astype(jnp.float32)),
                               np.asarray(ref), rtol=3e-2, atol=3e-2)

    print("KERNEL_OK")
</pallas_src>

<mosaic_0001>
module attributes {stable_mosaic.version = 11 : i64} {
  func.func @_pool_stage_kernel(%arg0: i32, %arg1: i32, %arg2: memref<1x128x256xbf16, #tpu.memory_space<vmem>>, %arg3: memref<256x128xbf16, #tpu.memory_space<vmem>>, %arg4: memref<1x128xf32, #tpu.memory_space<vmem>>, %arg5: memref<512x128xbf16, #tpu.memory_space<vmem>>, %arg6: memref<512x1xf32, #tpu.memory_space<vmem>>, %arg7: memref<512x128xf32, #tpu.memory_space<vmem>>, %arg8: memref<128x512xbf16, #tpu.memory_space<vmem>>, %arg9: memref<1x128x128xbf16, #tpu.memory_space<vmem>>, %arg10: memref<128x128xf32, #tpu.memory_space<vmem>>) attributes {dimension_semantics = [#tpu.dimension_semantics<parallel>, #tpu.dimension_semantics<arbitrary>], iteration_bounds = array<i64: 2, 1>, scalar_prefetch = 0 : i64, scratch_operands = 1 : i64, tpu.core_type = #tpu.core_type<tc>, window_params = [{transform_indices = @transform_0, window_bounds = array<i64: 1, 128, 256>}, {transform_indices = @transform_1, window_bounds = array<i64: 256, 128>}, {pipeline_mode = #tpu.pipeline_mode<synchronous>, transform_indices = @transform_2, window_bounds = array<i64: 1, 128>}, {pipeline_mode = #tpu.pipeline_mode<synchronous>, transform_indices = @transform_3, window_bounds = array<i64: 512, 128>}, {pipeline_mode = #tpu.pipeline_mode<synchronous>, transform_indices = @transform_4, window_bounds = array<i64: 512, 1>}, {pipeline_mode = #tpu.pipeline_mode<synchronous>, transform_indices = @transform_5, window_bounds = array<i64: 512, 128>}, {pipeline_mode = #tpu.pipeline_mode<synchronous>, transform_indices = @transform_6, window_bounds = array<i64: 128, 512>}, {transform_indices = @transform_7, window_bounds = array<i64: 1, 128, 128>}]} {
    %c0_i32 = arith.constant 0 : i32
    %0 = arith.cmpi eq, %arg1, %c0_i32 : i32
    %1 = arith.extui %0 : i1 to i32
    %c0_i32_0 = arith.constant 0 : i32
    %2 = arith.cmpi ne, %1, %c0_i32_0 : i32
    scf.if %2 {
      %cst_11 = arith.constant 0.000000e+00 : f32
      %13 = vector.broadcast %cst_11 : f32 to vector<128x128xf32>
      %c0_12 = arith.constant 0 : index
      %c0_13 = arith.constant 0 : index
      %14 = vector.load %arg10[%c0_12, %c0_13] : memref<128x128xf32, #tpu.memory_space<vmem>>, vector<128x128xf32>
      tpu.vector_store %arg10[%c0_12, %c0_13], %13 {strides = array<i32>} : memref<128x128xf32, #tpu.memory_space<vmem>>, vector<128x128xf32>,
    } else {
    }
    %c0 = arith.constant 0 : index
    %c0_1 = arith.constant 0 : index
    %3 = vector.load %arg10[%c0, %c0_1] : memref<128x128xf32, #tpu.memory_space<vmem>>, vector<128x128xf32>
    %c0_2 = arith.constant 0 : index
    %c0_3 = arith.constant 0 : index
    %c0_4 = arith.constant 0 : index
    %4 = vector.load %arg2[%c0_2, %c0_3, %c0_4] : memref<1x128x256xbf16, #tpu.memory_space<vmem>>, vector<1x128x256xbf16>
    %5 = vector.shape_cast %4 : vector<1x128x256xbf16> to vector<128x256xbf16>
    %c0_5 = arith.constant 0 : index
    %c0_6 = arith.constant 0 : index
    %6 = vector.load %arg3[%c0_5, %c0_6] : memref<256x128xbf16, #tpu.memory_space<vmem>>, vector<256x128xbf16>
    %cst = arith.constant dense<0.000000e+00> : vector<128x128xf32>
    %7 = tpu.matmul %5, %6, %cst {dimension_numbers = #tpu.dot_dimension_numbers<[1], [0], [0], [1], [0, 0, 1, 1], [], []>} : vector<128x256xbf16>, vector<256x128xbf16>, vector<128x128xf32> -> vector<128x128xf32>
    %8 = arith.addf %3, %7 : vector<128x128xf32>
    %c0_7 = arith.constant 0 : index
    %c0_8 = arith.constant 0 : index
    %9 = vector.load %arg10[%c0_7, %c0_8] : memref<128x128xf32, #tpu.memory_space<vmem>>, vector<128x128xf32>
    tpu.vector_store %arg10[%c0_7, %c0_8], %8 {strides = array<i32>} : memref<128x128xf32, #tpu.memory_space<vmem>>, vector<128x128xf32>,
    %c0_i32_9 = arith.constant 0 : i32
    %10 = arith.cmpi eq, %arg1, %c0_i32_9 : i32
    %11 = arith.extui %10 : i1 to i32
    %c0_i32_10 = arith.constant 0 : i32
    %12 = arith.cmpi ne, %11, %c0_i32_10 : i32
    scf.if %12 {
      %c0_11 = arith.constant 0 : index
      %c0_12 = arith.constant 0 : index
      %13 = vector.load %arg10[%c0_11, %c0_12] : memref<128x128xf32, #tpu.memory_space<vmem>>, vector<128x128xf32>
      %c0_13 = arith.constant 0 : index
      %c0_14 = arith.constant 0 : index
      %14 = vector.load %arg4[%c0_13, %c0_14] : memref<1x128xf32, #tpu.memory_space<vmem>>, vector<1x128xf32>
      %15 = vector.broadcast %14 : vector<1x128xf32> to vector<128x128xf32>
      %16 = arith.mulf %13, %15 : vector<128x128xf32>
      %17 = arith.truncf %16 : vector<128x128xf32> to vector<128x128xbf16>
      %c0_15 = arith.constant 0 : index
      %c0_16 = arith.constant 0 : index
      %18 = vector.load %arg5[%c0_15, %c0_16] : memref<512x128xbf16, #tpu.memory_space<vmem>>, vector<512x128xbf16>
      %cst_17 = arith.constant dense<0.000000e+00> : vector<512x128xf32>
      %19 = tpu.matmul %18, %17, %cst_17 {dimension_numbers = #tpu.dot_dimension_numbers<[1], [0], [0], [1], [0, 0, 1, 1], [], []>} : vector<512x128xbf16>, vector<128x128xbf16>, vector<512x128xf32> -> vector<512x128xf32>
      %c0_18 = arith.constant 0 : index
      %c0_19 = arith.constant 0 : index
      %20 = vector.load %arg6[%c0_18, %c0_19] : memref<512x1xf32, #tpu.memory_space<vmem>>, vector<512x1xf32>
      %21 = vector.broadcast %20 : vector<512x1xf32> to vector<512x128xf32>
      %22 = arith.addf %19, %21 : vector<512x128xf32>
      %cst_20 = arith.constant 0.000000e+00 : f32
      %23 = vector.broadcast %cst_20 : f32 to vector<512x128xf32>
      %24 = arith.maximumf %22, %23 : vector<512x128xf32>
      %c0_21 = arith.constant 0 : index
      %c0_22 = arith.constant 0 : index
      %25 = vector.load %arg7[%c0_21, %c0_22] : memref<512x128xf32, #tpu.memory_space<vmem>>, vector<512x128xf32>
      %26 = arith.mulf %24, %25 : vector<512x128xf32>
      %27 = arith.truncf %26 : vector<512x128xf32> to vector<512x128xbf16>
      %c0_23 = arith.constant 0 : index
      %c0_24 = arith.constant 0 : index
      %28 = vector.load %arg8[%c0_23, %c0_24] : memref<128x512xbf16, #tpu.memory_space<vmem>>, vector<128x512xbf16>
      %cst_25 = arith.constant dense<0.000000e+00> : vector<128x128xf32>
      %29 = tpu.matmul %28, %27, %cst_25 {dimension_numbers = #tpu.dot_dimension_numbers<[1], [0], [0], [1], [0, 0, 1, 1], [], []>} : vector<128x512xbf16>, vector<512x128xbf16>, vector<128x128xf32> -> vector<128x128xf32>
      %30 = arith.truncf %29 : vector<128x128xf32> to vector<128x128xbf16>
      %c0_26 = arith.constant 0 : index
      %c0_27 = arith.constant 0 : index
      %c0_28 = arith.constant 0 : index
      %31 = vector.load %arg9[%c0_26, %c0_27, %c0_28] : memref<1x128x128xbf16, #tpu.memory_space<vmem>>, vector<1x128x128xbf16>
      %32 = vector.shape_cast %31 : vector<1x128x128xbf16> to vector<128x128xbf16>
      %33 = vector.shape_cast %30 : vector<128x128xbf16> to vector<1x128x128xbf16>
      tpu.vector_store %arg9[%c0_26, %c0_27, %c0_28], %33 {strides = array<i32>} : memref<1x128x128xbf16, #tpu.memory_space<vmem>>, vector<1x128x128xbf16>,
    } else {
    }
    return
  }
  func.func @transform_0(%arg0: i32, %arg1: i32) -> (i32, i32, i32) {
    %c0_i32 = arith.constant 0 : i32
    %c0_i32_0 = arith.constant 0 : i32
    return %arg0, %c0_i32, %arg1 : i32, i32, i32
  }
  func.func @transform_1(%arg0: i32, %arg1: i32) -> (i32, i32) {
    %c0_i32 = arith.constant 0 : i32
    %c0_i32_0 = arith.constant 0 : i32
    return %arg1, %c0_i32 : i32, i32
  }
  func.func @transform_2(%arg0: i32, %arg1: i32) -> (i32, i32) {
    %c0_i32 = arith.constant 0 : i32
    %c0_i32_0 = arith.constant 0 : i32
    %c0_i32_1 = arith.constant 0 : i32
    return %c0_i32, %c0_i32_0 : i32, i32
  }
  func.func @transform_3(%arg0: i32, %arg1: i32) -> (i32, i32) {
    %c0_i32 = arith.constant 0 : i32
    %c0_i32_0 = arith.constant 0 : i32
    %c0_i32_1 = arith.constant 0 : i32
    return %c0_i32, %c0_i32_0 : i32, i32
  }
  func.func @transform_4(%arg0: i32, %arg1: i32) -> (i32, i32) {
    %c0_i32 = arith.constant 0 : i32
    %c0_i32_0 = arith.constant 0 : i32
    %c0_i32_1 = arith.constant 0 : i32
    return %c0_i32, %c0_i32_0 : i32, i32
  }
  func.func @transform_5(%arg0: i32, %arg1: i32) -> (i32, i32) {
    %c0_i32 = arith.constant 0 : i32
    %c0_i32_0 = arith.constant 0 : i32
    %c0_i32_1 = arith.constant 0 : i32
    return %c0_i32, %c0_i32_0 : i32, i32
  }
  func.func @transform_6(%arg0: i32, %arg1: i32) -> (i32, i32) {
    %c0_i32 = arith.constant 0 : i32
    %c0_i32_0 = arith.constant 0 : i32
    %c0_i32_1 = arith.constant 0 : i32
    return %c0_i32, %c0_i32_0 : i32, i32
  }
  func.func @transform_7(%arg0: i32, %arg1: i32) -> (i32, i32, i32) {
    %c0_i32 = arith.constant 0 : i32
    %c0_i32_0 = arith.constant 0 : i32
    %c0_i32_1 = arith.constant 0 : i32
    return %arg0, %c0_i32, %c0_i32_0 : i32, i32, i32
  }
}

</mosaic_0001>

<llo_original>
// kernel: tpu_custom_call.1
$region0: #{tpu_custom_call.1}
  #allocation0 [shape = 'u32[]', space=smem, size = 0x4, offset = 0x4, fixed_abs, tag = 'smem constant byte address 0x4 - core index']
  #allocation1 [shape = 'u32[72,128]{1,0:T(1,128)}', space=vmem, size = 0x9000, scoped, tag = 'internal scratch']
  #allocation2 [shape = 'f32[128,128]{1,0:T(8,128)}', space=vmem, size = 0x10000, scoped, tag = 'scratch operand']
  %s0 = inlined_call_operand.hbm [shape: bf16[2,128,256], index: 0, kind: input, shape index: {}]
  %s1 = inlined_call_operand.hbm [shape: bf16[256,128], index: 1, kind: input, shape index: {}]
  %s2 = inlined_call_operand.vmem [shape: f32[1,128], index: 2, kind: input, shape index: {}]
  %s3 = inlined_call_operand.hbm [shape: bf16[512,128], index: 3, kind: input, shape index: {}]
  %s4 = inlined_call_operand.vmem [shape: f32[512,1], index: 4, kind: input, shape index: {}]
  %s5 = inlined_call_operand.vmem [shape: f32[512,128], index: 5, kind: input, shape index: {}]
  %s6 = inlined_call_operand.hbm [shape: bf16[128,512], index: 6, kind: input, shape index: {}]
  %s7 = inlined_call_operand.hbm [shape: bf16[2,128,128], index: 7, kind: output, shape index: {}]
  %s8 = sld [smem:[#allocation0]]
  $region85: #{tpu_custom_call.1} parent=0
    _
  %s10 = ssub.s32 1, %s8
  %s11 = scalar_select 0, %s10, %s8
  $region1: #{tpu_custom_call.1} parent=0
    #allocation3 [shape = 'u8[131072]{0}', space=vmem, size = 0x20000, scoped, tag = 'input window, operand 0']
    #allocation4 [shape = 's32[2]{0}', space=sflag, size = 0x8, scoped, tag = 'scoped memory for tpu_custom_call.1']
    #allocation5 [shape = 's32[2]{0}', space=sflag, size = 0x8, scoped, tag = 'scoped memory for tpu_custom_call.1']
    #allocation6 [shape = 'u8[65536]{0}', space=vmem, size = 0x10000, scoped, tag = 'input window, operand 1, single buffered']
    #allocation7 [shape = 's32[1]{0}', space=sflag, size = 0x4, scoped, tag = 'scoped memory for tpu_custom_call.1']
    #allocation8 [shape = 'u8[131072]{0}', space=vmem, size = 0x20000, scoped, tag = 'input window, operand 3, single buffered']
    #allocation9 [shape = 'u8[131072]{0}', space=vmem, size = 0x20000, scoped, tag = 'input window, operand 6, single buffered']
    #allocation10 [shape = 's32[1]{0}', space=sflag, size = 0x4, scoped, tag = 'scoped memory for tpu_custom_call.1']
    #allocation11 [shape = 'u8[65536]{0}', space=vmem, size = 0x10000, scoped, tag = 'output window, operand 0']
    %12 = vsyncpa [#allocation4], 0
    %s13 = scalar_lea.sflag [#allocation4], 1
    %14 = vsyncpa %s13, 0
    %15 = vsyncpa [#allocation7], 0
    %16 = vsyncpa [#allocation10], 0
    %17 = vsyncpa [#allocation5], 0
    %s18 = scalar_lea.sflag [#allocation5], 1
    %19 = vsyncpa %s18, 0
    loop: start=0, step=1, limit=4
    $region2: #{tpu_custom_call.1} parent=1 // loop_pre_header
      _
    $region3: #{tpu_custom_call.1} parent=1 // loop_header
      %s21 = sphi 0, %s25
      %p22 = scmp.ge.s32.totalorder %s21, 4
      %s28 = sphi 0, %s40
      %s29 = sphi 0, %s36
      %s30 = sphi 0, %s28
      %s31 = sphi 0, %s29
      %s32 = sphi 0, %s30
      %s33 = sphi 0, %s31
      %s45 = sphi 0, %s47
      %s48 = sphi 0, %s45
      %s49 = sphi 0, %s48
      %s65 = sphi 0, %s49
      %s71 = sphi 0, %s73
      %s74 = sphi 0, %s71
      %s75 = sphi 0, %s74
      %s91 = sphi 0, %s75
      %s95 = sphi 0, %s95
      %s97 = sphi 0, %s95
      %s98 = sphi 0, %s97
      %s112 = sphi 0, %s98
      %s116 = sphi 0, %s116
      %s118 = sphi 0, %s116
      %s119 = sphi 0, %s118
      %s133 = sphi 0, %s119
      %s137 = sphi 0, %s137
      %s139 = sphi 0, %s137
      %s140 = sphi 0, %s139
      %s154 = sphi 0, %s140
      %s158 = sphi 0, %s158
      %s160 = sphi 0, %s158
      %s161 = sphi 0, %s160
      %s175 = sphi 0, %s161
      %s179 = sphi 0, %s179
      %s181 = sphi 0, %s179
      %s182 = sphi 0, %s181
      %s196 = sphi 0, %s182
      %s202 = sphi 0, %s204
      %s205 = sphi 0, %s202
      %s206 = sphi 0, %s205
      %s222 = sphi 0, %s206
    $region4: #{tpu_custom_call.1} parent=1 // loop_header_branch
      %24 = sbr.rel (%p22) target = $region8
    $region5: #{tpu_custom_call.1} parent=1 // loop_body
      %s26 = ssub.s32 %s21, 1
      %s27 = ssub.s32 %s21, 2
      %s34 = sadd.s32 1, %s29
      %p35 = scmp.ge.s32.totalorder %s34, 1
      %s36 = scalar_select %p35, 0, %s34
      %s37 = sadd.s32 1, %s28
      %s38 = scalar_select %p35, %s37, %s28
      %p39 = scmp.ge.s32.totalorder %s38, 2
      %s40 = scalar_select %p39, 0, %s38
      %s41 = ssub.s32 %s28, %s40
      %s42 = ssub.s32 %s29, %s36
      %s43 = sor.u32 %s41, %s42
      %p44 = scmp.eq.s32.totalorder %s43, 0
      %s46 = sadd.s32 %s45, 1
      %s47 = scalar_select %p44, %s45, %s46
      %p50 = pneg %p44
      %p51 = scmp.eq.s32.totalorder %s21, 1
      %p52 = por %p50, %p51
      %p53 = scmp.ne.s32.totalorder %s45, %s48
      %p54 = scmp.eq.s32.totalorder %s21, 0
      %p55 = por %p53, %p54
      %p56 = scmp.ne.s32.totalorder %s45, %s48
      %p57 = scmp.eq.s32.totalorder %s26, 1
      %p58 = por %p56, %p57
      %p59 = scmp.ne.s32.totalorder %s48, %s49
      %p60 = scmp.eq.s32.totalorder %s26, 0
      %p61 = por %p59, %p60
      %p62 = scmp.ne.s32.totalorder %s48, %s49
      %p63 = scmp.eq.s32.totalorder %s27, 1
      %p64 = por %p62, %p63
      %p66 = scmp.ne.s32.totalorder %s49, %s65
      %p67 = scmp.eq.s32.totalorder %s27, 0
      %p68 = por %p66, %p67
      %s69 = ssub.s32 %s29, %s36
      %p70 = scmp.eq.s32.totalorder %s69, 0
      %s72 = sadd.s32 %s71, 1
      %s73 = scalar_select %p70, %s71, %s72
      %p76 = pneg %p70
      %p77 = scmp.eq.s32.totalorder %s21, 1
      %p78 = por %p76, %p77
      %p79 = scmp.ne.s32.totalorder %s71, %s74
      %p80 = scmp.eq.s32.totalorder %s21, 0
      %p81 = por %p79, %p80
      %p82 = scmp.ne.s32.totalorder %s71, %s74
      %p83 = scmp.eq.s32.totalorder %s26, 1
      %p84 = por %p82, %p83
      %p85 = scmp.ne.s32.totalorder %s74, %s75
      %p86 = scmp.eq.s32.totalorder %s26, 0
      %p87 = por %p85, %p86
      %p88 = scmp.ne.s32.totalorder %s74, %s75
      %p89 = scmp.eq.s32.totalorder %s27, 1
      %p90 = por %p88, %p89
      %p92 = scmp.ne.s32.totalorder %s75, %s91
      %p93 = scmp.eq.s32.totalorder %s27, 0
      %p94 = por %p92, %p93
      %s96 = sadd.s32 %s95, 1
      %p99 = scmp.eq.s32.totalorder %s21, 1
      %p100 = scmp.ne.s32.totalorder %s95, %s97
      %p101 = scmp.eq.s32.totalorder %s21, 0
      %p102 = por %p100, %p101
      %p103 = scmp.ne.s32.totalorder %s95, %s97
      %p104 = scmp.eq.s32.totalorder %s26, 1
      %p105 = por %p103, %p104
      %p106 = scmp.ne.s32.totalorder %s97, %s98
      %p107 = scmp.eq.s32.totalorder %s26, 0
      %p108 = por %p106, %p107
      %p109 = scmp.ne.s32.totalorder %s97, %s98
      %p110 = scmp.eq.s32.totalorder %s27, 1
      %p111 = por %p109, %p110
      %p113 = scmp.ne.s32.totalorder %s98, %s112
      %p114 = scmp.eq.s32.totalorder %s27, 0
      %p115 = por %p113, %p114
      %s117 = sadd.s32 %s116, 1
      %p120 = scmp.eq.s32.totalorder %s21, 1
      %p121 = scmp.ne.s32.totalorder %s116, %s118
      %p122 = scmp.eq.s32.totalorder %s21, 0
      %p123 = por %p121, %p122
      %p124 = scmp.ne.s32.totalorder %s116, %s118
      %p125 = scmp.eq.s32.totalorder %s26, 1
      %p126 = por %p124, %p125
      %p127 = scmp.ne.s32.totalorder %s118, %s119
      %p128 = scmp.eq.s32.totalorder %s26, 0
      %p129 = por %p127, %p128
      %p130 = scmp.ne.s32.totalorder %s118, %s119
      %p131 = scmp.eq.s32.totalorder %s27, 1
      %p132 = por %p130, %p131
      %p134 = scmp.ne.s32.totalorder %s119, %s133
      %p135 = scmp.eq.s32.totalorder %s27, 0
      %p136 = por %p134, %p135
      %s138 = sadd.s32 %s137, 1
      %p141 = scmp.eq.s32.totalorder %s21, 1
      %p142 = scmp.ne.s32.totalorder %s137, %s139
      %p143 = scmp.eq.s32.totalorder %s21, 0
      %p144 = por %p142, %p143
      %p145 = scmp.ne.s32.totalorder %s137, %s139
      %p146 = scmp.eq.s32.totalorder %s26, 1
      %p147 = por %p145, %p146
      %p148 = scmp.ne.s32.totalorder %s139, %s140
      %p149 = scmp.eq.s32.totalorder %s26, 0
      %p150 = por %p148, %p149
      %p151 = scmp.ne.s32.totalorder %s139, %s140
      %p152 = scmp.eq.s32.totalorder %s27, 1
      %p153 = por %p151, %p152
      %p155 = scmp.ne.s32.totalorder %s140, %s154
      %p156 = scmp.eq.s32.totalorder %s27, 0
      %p157 = por %p155, %p156
      %s159 = sadd.s32 %s158, 1
      %p162 = scmp.eq.s32.totalorder %s21, 1
      %p163 = scmp.ne.s32.totalorder %s158, %s160
      %p164 = scmp.eq.s32.totalorder %s21, 0
      %p165 = por %p163, %p164
      %p166 = scmp.ne.s32.totalorder %s158, %s160
      %p167 = scmp.eq.s32.totalorder %s26, 1
      %p168 = por %p166, %p167
      %p169 = scmp.ne.s32.totalorder %s160, %s161
      %p170 = scmp.eq.s32.totalorder %s26, 0
      %p171 = por %p169, %p170
      %p172 = scmp.ne.s32.totalorder %s160, %s161
      %p173 = scmp.eq.s32.totalorder %s27, 1
      %p174 = por %p172, %p173
      %p176 = scmp.ne.s32.totalorder %s161, %s175
      %p177 = scmp.eq.s32.totalorder %s27, 0
      %p178 = por %p176, %p177
      %s180 = sadd.s32 %s179, 1
      %p183 = scmp.eq.s32.totalorder %s21, 1
      %p184 = scmp.ne.s32.totalorder %s179, %s181
      %p185 = scmp.eq.s32.totalorder %s21, 0
      %p186 = por %p184, %p185
      %p187 = scmp.ne.s32.totalorder %s179, %s181
      %p188 = scmp.eq.s32.totalorder %s26, 1
      %p189 = por %p187, %p188
      %p190 = scmp.ne.s32.totalorder %s181, %s182
      %p191 = scmp.eq.s32.totalorder %s26, 0
      %p192 = por %p190, %p191
      %p193 = scmp.ne.s32.totalorder %s181, %s182
      %p194 = scmp.eq.s32.totalorder %s27, 1
      %p195 = por %p193, %p194
      %p197 = scmp.ne.s32.totalorder %s182, %s196
      %p198 = scmp.eq.s32.totalorder %s27, 0
      %p199 = por %p197, %p198
      %s200 = ssub.s32 %s28, %s40
      %p201 = scmp.eq.s32.totalorder %s200, 0
      %s203 = sadd.s32 %s202, 1
      %s204 = scalar_select %p201, %s202, %s203
      %p207 = pneg %p201
      %p208 = scmp.eq.s32.totalorder %s21, 1
      %p209 = por %p207, %p208
      %p210 = scmp.ne.s32.totalorder %s202, %s205
      %p211 = scmp.eq.s32.totalorder %s21, 0
      %p212 = por %p210, %p211
      %p213 = scmp.ne.s32.totalorder %s202, %s205
      %p214 = scmp.eq.s32.totalorder %s26, 1
      %p215 = por %p213, %p214
      %p216 = scmp.ne.s32.totalorder %s205, %s206
      %p217 = scmp.eq.s32.totalorder %s26, 0
      %p218 = por %p216, %p217
      %p219 = scmp.ne.s32.totalorder %s205, %s206
      %p220 = scmp.eq.s32.totalorder %s27, 1
      %p221 = por %p219, %p220
      %p223 = scmp.ne.s32.totalorder %s206, %s222
      %p224 = scmp.eq.s32.totalorder %s27, 0
      %p225 = por %p223, %p224
      %p226 = scmp.le.s32.totalorder 1, %s21
      %p227 = scmp.lt.s32.totalorder %s21, 3
      %p228 = pnand %p226, %p227
      %p229 = pneg %p228
      // Predicated region
      $region9: #{tpu_custom_call.1} parent=5 // pred_check
        _
      $region10: #{tpu_custom_call.1} parent=5 // pred_check_branch
        %231 = sbr.rel (%p228) target = $region12
      $region11: #{tpu_custom_call.1} parent=5 // pred_region
        %s232 = ssub.s32 %s21, 1
        // Predicated region
        $region13: #{tpu_custom_call.1} parent=11 // pred_check
          %p233 = pneg %p87
        $region14: #{tpu_custom_call.1} parent=11 // pred_check_branch
          %235 = sbr.rel (%p233) target = $region16
        $region15: #{tpu_custom_call.1} parent=11 // pred_region
          %s236 = smul.u32 32, %s31
          %238 = vsyncadd [#allocation7], 0
          %s239 = smul.addr %s236, 4
          %s240 = scalar_lea.hbm %s1, %s239
          %s241 = sshll.u32 %s240, 4
          %s242 = int_to_ptr.hbm [resolvable:$true] %s241
          %s243 = sshll.u32 [#allocation6], 4
          %s244 = int_to_ptr.vmem [resolvable:$true] %s243
          %249 = dma.hbm_to_vmem [thread:$0]  %s242, 2048, %s244, [#allocation7], 64, 64, 4
        $region16: #{tpu_custom_call.1} parent=11 // pred_fallthru
          _
        // Predicated region
        $region17: #{tpu_custom_call.1} parent=11 // pred_check
          %p250 = pneg %p108
        $region18: #{tpu_custom_call.1} parent=11 // pred_check_branch
          %252 = sbr.rel (%p250) target = $region20
        $region19: #{tpu_custom_call.1} parent=11 // pred_region
          _
        $region20: #{tpu_custom_call.1} parent=11 // pred_fallthru
          _
        // Predicated region
        $region21: #{tpu_custom_call.1} parent=11 // pred_check
          %p253 = pneg %p129
        $region22: #{tpu_custom_call.1} parent=11 // pred_check_branch
          %255 = sbr.rel (%p253) target = $region24
        $region23: #{tpu_custom_call.1} parent=11 // pred_region
          %257 = vsyncadd [#allocation7], 0
          %s258 = sshll.u32 %s3, 4
          %s259 = int_to_ptr.hbm [resolvable:$true] %s258
          %s260 = sshll.u32 [#allocation8], 4
          %s261 = int_to_ptr.vmem [resolvable:$true] %s260
          %266 = dma.hbm_to_vmem [thread:$0]  %s259, 4096, %s261, [#allocation7], 64, 64, 4
        $region24: #{tpu_custom_call.1} parent=11 // pred_fallthru
          _
        // Predicated region
        $region25: #{tpu_custom_call.1} parent=11 // pred_check
          %p267 = pneg %p150
        $region26: #{tpu_custom_call.1} parent=11 // pred_check_branch
          %269 = sbr.rel (%p267) target = $region28
        $region27: #{tpu_custom_call.1} parent=11 // pred_region
          _
        $region28: #{tpu_custom_call.1} parent=11 // pred_fallthru
          _
        // Predicated region
        $region29: #{tpu_custom_call.1} parent=11 // pred_check
          %p270 = pneg %p171
        $region30: #{tpu_custom_call.1} parent=11 // pred_check_branch
          %272 = sbr.rel (%p270) target = $region32
        $region31: #{tpu_custom_call.1} parent=11 // pred_region
          _
        $region32: #{tpu_custom_call.1} parent=11 // pred_fallthru
          _
        // Predicated region
        $region33: #{tpu_custom_call.1} parent=11 // pred_check
          %p273 = pneg %p192
        $region34: #{tpu_custom_call.1} parent=11 // pred_check_branch
          %275 = sbr.rel (%p273) target = $region36
        $region35: #{tpu_custom_call.1} parent=11 // pred_region
          %277 = vsyncadd [#allocation10], 0
          %s278 = sshll.u32 %s6, 4
          %s279 = int_to_ptr.hbm [resolvable:$true] %s278
          %s280 = sshll.u32 [#allocation9], 4
          %s281 = int_to_ptr.vmem [resolvable:$true] %s280
          %286 = dma.hbm_to_vmem [thread:$0]  %s279, 4096, %s281, [#allocation10], 256, 256, 16
        $region36: #{tpu_custom_call.1} parent=11 // pred_fallthru
          _
      $region12: #{tpu_custom_call.1} parent=5 // pred_fallthru
        _
      %p287 = scmp.lt.s32.totalorder %s21, 2
      // Predicated region
      $region37: #{tpu_custom_call.1} parent=5 // pred_check
        %p288 = pneg %p287
      $region38: #{tpu_custom_call.1} parent=5 // pred_check_branch
        %290 = sbr.rel (%p288) target = $region40
      $region39: #{tpu_custom_call.1} parent=5 // pred_region
        // Predicated region
        $region41: #{tpu_custom_call.1} parent=39 // pred_check
          %p291 = pneg %p55
        $region42: #{tpu_custom_call.1} parent=39 // pred_check_branch
          %293 = sbr.rel (%p291) target = $region44
        $region43: #{tpu_custom_call.1} parent=39 // pred_region
          %s294 = sand.u32 %s45, 1
          %s295 = scalar_lea.sflag [#allocation4], %s294
          %s296 = sand.u32 %s45, 1
          %s297 = smul.addr %s296, 128
          %s298 = scalar_lea.vmem [#allocation3], %s297
          %s299 = smul.u32 2, %s29
          %301 = vsyncadd %s295, 0
          %s302 = smul.addr %s28, 32
          %s303 = sadd.s32 %s299, %s302
          %s304 = smul.addr %s303, 4
          %s305 = scalar_lea.hbm %s0, %s304
          %s306 = sshll.u32 %s305, 4
          %s307 = int_to_ptr.hbm [resolvable:$true] %s306
          %s308 = sshll.u32 %s298, 4
          %s309 = int_to_ptr.vmem [resolvable:$true] %s308
          %314 = dma.hbm_to_vmem [thread:$0]  %s307, 2048, %s309, %s295, 128, 128, 8
        $region44: #{tpu_custom_call.1} parent=39 // pred_fallthru
          _
      $region40: #{tpu_custom_call.1} parent=5 // pred_fallthru
        _
      %p315 = scmp.le.s32.totalorder 1, %s21
      %p316 = scmp.lt.s32.totalorder %s21, 3
      %p317 = pnand %p315, %p316
      %p318 = pneg %p317
      // Predicated region
      $region45: #{tpu_custom_call.1} parent=5 // pred_check
        _
      $region46: #{tpu_custom_call.1} parent=5 // pred_check_branch
        %320 = sbr.rel (%p317) target = $region48
      $region47: #{tpu_custom_call.1} parent=5 // pred_region
        %s321 = ssub.s32 %s21, 1
        %s322 = sand.u32 %s48, 1
        %s323 = scalar_lea.sflag [#allocation4], %s322
        %s324 = sand.u32 %s48, 1
        %s325 = smul.addr %s324, 128
        %s326 = scalar_lea.vmem [#allocation3], %s325
        // Predicated region
        $region49: #{tpu_custom_call.1} parent=47 // pred_check
          %p327 = pneg %p61
        $region50: #{tpu_custom_call.1} parent=47 // pred_check_branch
          %329 = sbr.rel (%p327) target = $region52
        $region51: #{tpu_custom_call.1} parent=47 // pred_region
          %331 = dma.done %s323, 2048
        $region52: #{tpu_custom_call.1} parent=47 // pred_fallthru
          _
        // Predicated region
        $region53: #{tpu_custom_call.1} parent=47 // pred_check
          %p332 = pneg %p87
        $region54: #{tpu_custom_call.1} parent=47 // pred_check_branch
          %334 = sbr.rel (%p332) target = $region56
        $region55: #{tpu_custom_call.1} parent=47 // pred_region
          %336 = dma.done [#allocation7], 2048
        $region56: #{tpu_custom_call.1} parent=47 // pred_fallthru
          _
        // Predicated region
        $region57: #{tpu_custom_call.1} parent=47 // pred_check
          %p337 = pneg %p129
        $region58: #{tpu_custom_call.1} parent=47 // pred_check_branch
          %339 = sbr.rel (%p337) target = $region60
        $region59: #{tpu_custom_call.1} parent=47 // pred_region
          %341 = dma.done [#allocation7], 4096
        $region60: #{tpu_custom_call.1} parent=47 // pred_fallthru
          _
        // Predicated region
        $region61: #{tpu_custom_call.1} parent=47 // pred_check
          %p342 = pneg %p192
        $region62: #{tpu_custom_call.1} parent=47 // pred_check_branch
          %344 = sbr.rel (%p342) target = $region64
        $region63: #{tpu_custom_call.1} parent=47 // pred_region
          %346 = dma.done [#allocation10], 4096
        $region64: #{tpu_custom_call.1} parent=47 // pred_fallthru
          _
        %s347 = sand.u32 %s48, 1
        %s348 = scalar_lea.sflag [#allocation4], %s347
        %s349 = sand.u32 %s48, 1
        %s350 = smul.addr %s349, 128
        %s351 = scalar_lea.vmem [#allocation3], %s350
        %p352 = pneg %p61
        %p353 = pneg %p58
        %p354 = pneg %p87
        %p355 = pneg %p84
        %p356 = pneg %p108
        %p357 = pneg %p105
        %p358 = pneg %p129
        %p359 = pneg %p126
        %p360 = pneg %p150
        %p361 = pneg %p147
        %p362 = pneg %p171
        %p363 = pneg %p168
        %p364 = pneg %p192
        %p365 = pneg %p189
        %p366 = pneg %p218
        %p367 = pneg %p215
        %s368 = sand.u32 %s205, 1
        %s369 = scalar_lea.sflag [#allocation5], %s368
        %s370 = sand.u32 %s205, 1
        %s371 = smul.addr %s370, 64
        %s372 = scalar_lea.vmem [#allocation11], %s371
        %s373 = smul.u32 2, %s31
        %s374 = smul.u32 32, %s31
        %p375 = scmp.eq.s32.totalorder %s31, 0
        // Predicated region
        $region65: #{tpu_custom_call.1} parent=47 // pred_check
          %p376 = pneg %p375
        $region66: #{tpu_custom_call.1} parent=47 // pred_check_branch
          %378 = sbr.rel (%p376) target = $region68
        $region67: #{tpu_custom_call.1} parent=47 // pred_region
          %379 = vst [vmem:[#allocation2] sm:$0xff] 0.0
          %380 = vst [vmem:[#allocation2 + $0x8] sm:$0xff] 0.0
          %381 = vst [vmem:[#allocation2 + $0x10] sm:$0xff] 0.0
          %382 = vst [vmem:[#allocation2 + $0x18] sm:$0xff] 0.0
          %383 = vst [vmem:[#allocation2 + $0x20] sm:$0xff] 0.0
          %384 = vst [vmem:[#allocation2 + $0x28] sm:$0xff] 0.0
          %385 = vst [vmem:[#allocation2 + $0x30] sm:$0xff] 0.0
          %386 = vst [vmem:[#allocation2 + $0x38] sm:$0xff] 0.0
          %387 = vst [vmem:[#allocation2 + $0x40] sm:$0xff] 0.0
          %388 = vst [vmem:[#allocation2 + $0x48] sm:$0xff] 0.0
          %389 = vst [vmem:[#allocation2 + $0x50] sm:$0xff] 0.0
          %390 = vst [vmem:[#allocation2 + $0x58] sm:$0xff] 0.0
          %391 = vst [vmem:[#allocation2 + $0x60] sm:$0xff] 0.0
          %392 = vst [vmem:[#allocation2 + $0x68] sm:$0xff] 0.0
          %393 = vst [vmem:[#allocation2 + $0x70] sm:$0xff] 0.0
          %394 = vst [vmem:[#allocation2 + $0x78] sm:$0xff] 0.0
        $region68: #{tpu_custom_call.1} parent=47 // pred_fallthru
          _
        %v395 = vld [vmem:[#allocation2] sm:$0xff]
        %v396 = vld [vmem:[#allocation2 + $0x8] sm:$0xff]
        %v397 = vld [vmem:[#allocation2 + $0x10] sm:$0xff]
        %v398 = vld [vmem:[#allocation2 + $0x18] sm:$0xff]
        %v399 = vld [vmem:[#allocation2 + $0x20] sm:$0xff]
        %v400 = vld [vmem:[#allocation2 + $0x28] sm:$0xff]
        %v401 = vld [vmem:[#allocation2 + $0x30] sm:$0xff]
        %v402 = vld [vmem:[#allocation2 + $0x38] sm:$0xff]
        %v403 = vld [vmem:[#allocation2 + $0x40] sm:$0xff]
        %v404 = vld [vmem:[#allocation2 + $0x48] sm:$0xff]
        %v405 = vld [vmem:[#allocation2 + $0x50] sm:$0xff]
        %v406 = vld [vmem:[#allocation2 + $0x58] sm:$0xff]
        %v407 = vld [vmem:[#allocation2 + $0x60] sm:$0xff]
        %v408 = vld [vmem:[#allocation2 + $0x68] sm:$0xff]
        %v409 = vld [vmem:[#allocation2 + $0x70] sm:$0xff]
        %v410 = vld [vmem:[#allocation2 + $0x78] sm:$0xff]
        %v411 = vld [vmem:[%s326] sm:$0xff]
        %v412 = vld [vmem:[%s326 + $0x8] sm:$0xff]
        %v413 = vld [vmem:[%s326 + $0x10] sm:$0xff]
        %v414 = vld [vmem:[%s326 + $0x18] sm:$0xff]
        %v415 = vld [vmem:[%s326 + $0x20] sm:$0xff]
        %v416 = vld [vmem:[%s326 + $0x28] sm:$0xff]
        %v417 = vld [vmem:[%s326 + $0x30] sm:$0xff]
        %v418 = vld [vmem:[%s326 + $0x38] sm:$0xff]
        %v419 = vld [vmem:[%s326 + $0x40] sm:$0xff]
        %v420 = vld [vmem:[%s326 + $0x48] sm:$0xff]
        %v421 = vld [vmem:[%s326 + $0x50] sm:$0xff]
        %v422 = vld [vmem:[%s326 + $0x58] sm:$0xff]
        %v423 = vld [vmem:[%s326 + $0x60] sm:$0xff]
        %v424 = vld [vmem:[%s326 + $0x68] sm:$0xff]
        %v425 = vld [vmem:[%s326 + $0x70] sm:$0xff]
        %v426 = vld [vmem:[%s326 + $0x78] sm:$0xff]
        %v427 = vld [vmem:[#allocation6] sm:$0xf]
        %v428 = vld [vmem:[#allocation6 + $0x4] sm:$0xf]
        %v429 = vld [vmem:[#allocation6 + $0x8] sm:$0xf]
        %v430 = vld [vmem:[#allocation6 + $0xc] sm:$0xf]
        %v431 = vld [vmem:[#allocation6 + $0x10] sm:$0xf]
        %v432 = vld [vmem:[#allocation6 + $0x14] sm:$0xf]
        %v433 = vld [vmem:[#allocation6 + $0x18] sm:$0xf]
        %v434 = vld [vmem:[#allocation6 + $0x1c] sm:$0xf]
        %v435 = vld [vmem:[#allocation6 + $0x20] sm:$0xf]
        %v436 = vld [vmem:[#allocation6 + $0x24] sm:$0xf]
        %v437 = vld [vmem:[#allocation6 + $0x28] sm:$0xf]
        %v438 = vld [vmem:[#allocation6 + $0x2c] sm:$0xf]
        %v439 = vld [vmem:[#allocation6 + $0x30] sm:$0xf]
        %v440 = vld [vmem:[#allocation6 + $0x34] sm:$0xf]
        %v441 = vld [vmem:[#allocation6 + $0x38] sm:$0xf]
        %v442 = vld [vmem:[#allocation6 + $0x3c] sm:$0xf]
        %v443 = vld [vmem:[#allocation6 + $0x40] sm:$0xf]
        %v444 = vld [vmem:[#allocation6 + $0x44] sm:$0xf]
        %v445 = vld [vmem:[#allocation6 + $0x48] sm:$0xf]
        %v446 = vld [vmem:[#allocation6 + $0x4c] sm:$0xf]
        %v447 = vld [vmem:[#allocation6 + $0x50] sm:$0xf]
        %v448 = vld [vmem:[#allocation6 + $0x54] sm:$0xf]
        %v449 = vld [vmem:[#allocation6 + $0x58] sm:$0xf]
        %v450 = vld [vmem:[#allocation6 + $0x5c] sm:$0xf]
        %v451 = vld [vmem:[#allocation6 + $0x60] sm:$0xf]
        %v452 = vld [vmem:[#allocation6 + $0x64] sm:$0xf]
        %v453 = vld [vmem:[#allocation6 + $0x68] sm:$0xf]
        %v454 = vld [vmem:[#allocation6 + $0x6c] sm:$0xf]
        %v455 = vld [vmem:[#allocation6 + $0x70] sm:$0xf]
        %v456 = vld [vmem:[#allocation6 + $0x74] sm:$0xf]
        %v457 = vld [vmem:[#allocation6 + $0x78] sm:$0xf]
        %v458 = vld [vmem:[#allocation6 + $0x7c] sm:$0xf]
        %v475 = vunpack.c.l.b16 %v411
        %v476 = vunpack.c.h.b16 %v411
        %v477 = vunpack.c.l.b16 %v412
        %v478 = vunpack.c.h.b16 %v412
        %v479 = vunpack.c.l.b16 %v413
        %v480 = vunpack.c.h.b16 %v413
        %v481 = vunpack.c.l.b16 %v414
        %v482 = vunpack.c.h.b16 %v414
        %v483 = vunpack.c.l.b16 %v415
        %v484 = vunpack.c.h.b16 %v415
        %v485 = vunpack.c.l.b16 %v416
        %v486 = vunpack.c.h.b16 %v416
        %v487 = vunpack.c.l.b16 %v417
        %v488 = vunpack.c.h.b16 %v417
        %v489 = vunpack.c.l.b16 %v418
        %v490 = vunpack.c.h.b16 %v418
        %v491 = vunpack.c.l.b16 %v419
        %v492 = vunpack.c.h.b16 %v419
        %v493 = vunpack.c.l.b16 %v420
        %v494 = vunpack.c.h.b16 %v420
        %v495 = vunpack.c.l.b16 %v421
        %v496 = vunpack.c.h.b16 %v421
        %v497 = vunpack.c.l.b16 %v422
        %v498 = vunpack.c.h.b16 %v422
        %v499 = vunpack.c.l.b16 %v423
        %v500 = vunpack.c.h.b16 %v423
        %v501 = vunpack.c.l.b16 %v424
        %v502 = vunpack.c.h.b16 %v424
        %v503 = vunpack.c.l.b16 %v425
        %v504 = vunpack.c.h.b16 %v425
        %v505 = vunpack.c.l.b16 %v426
        %v506 = vunpack.c.h.b16 %v426
        %v507 = vpack.c.b16 %v477, %v475
        %v508 = vpack.c.b16 %v478, %v476
        %v509 = vpack.c.b16 %v481, %v479
        %v510 = vpack.c.b16 %v482, %v480
        %v511 = vpack.c.b16 %v485, %v483
        %v512 = vpack.c.b16 %v486, %v484
        %v513 = vpack.c.b16 %v489, %v487
        %v514 = vpack.c.b16 %v490, %v488
        %v515 = vpack.c.b16 %v493, %v491
        %v516 = vpack.c.b16 %v494, %v492
        %v517 = vpack.c.b16 %v497, %v495
        %v518 = vpack.c.b16 %v498, %v496
        %v519 = vpack.c.b16 %v501, %v499
        %v520 = vpack.c.b16 %v502, %v500
        %v521 = vpack.c.b16 %v505, %v503
        %v522 = vpack.c.b16 %v506, %v504
        %v571 = vunpack.c.l.b16 %v427
        %v572 = vunpack.c.l.b16 %v428
        %v573 = vunpack.c.l.b16 %v429
        %v574 = vunpack.c.l.b16 %v430
        %v575 = vunpack.c.l.b16 %v431
        %v576 = vunpack.c.l.b16 %v432
        %v577 = vunpack.c.l.b16 %v433
        %v578 = vunpack.c.l.b16 %v434
        %v579 = vunpack.c.l.b16 %v435
        %v580 = vunpack.c.l.b16 %v436
        %v581 = vunpack.c.l.b16 %v437
        %v582 = vunpack.c.l.b16 %v438
        %v583 = vunpack.c.l.b16 %v439
        %v584 = vunpack.c.l.b16 %v440
        %v585 = vunpack.c.l.b16 %v441
        %v586 = vunpack.c.l.b16 %v442
        %v587 = vunpack.c.l.b16 %v443
        %v588 = vunpack.c.l.b16 %v444
        %v589 = vunpack.c.l.b16 %v445
        %v590 = vunpack.c.l.b16 %v446
        %v591 = vunpack.c.l.b16 %v447
        %v592 = vunpack.c.l.b16 %v448
        %v593 = vunpack.c.l.b16 %v449
        %v594 = vunpack.c.l.b16 %v450
        %v595 = vunpack.c.l.b16 %v451
        %v596 = vunpack.c.l.b16 %v452
        %v597 = vunpack.c.l.b16 %v453
        %v598 = vunpack.c.l.b16 %v454
        %v599 = vunpack.c.l.b16 %v455
        %v600 = vunpack.c.l.b16 %v456
        %v601 = vunpack.c.l.b16 %v457
        %v602 = vunpack.c.l.b16 %v458
        %v603 = vpack.c.b16 %v572, %v571
        %v604 = vpack.c.b16 %v574, %v573
        %v605 = vpack.c.b16 %v576, %v575
        %v606 = vpack.c.b16 %v578, %v577
        %v607 = vpack.c.b16 %v580, %v579
        %v608 = vpack.c.b16 %v582, %v581
        %v609 = vpack.c.b16 %v584, %v583
        %v610 = vpack.c.b16 %v586, %v585
        %v611 = vpack.c.b16 %v588, %v587
        %v612 = vpack.c.b16 %v590, %v589
        %v613 = vpack.c.b16 %v592, %v591
        %v614 = vpack.c.b16 %v594, %v593
        %v615 = vpack.c.b16 %v596, %v595
        %v616 = vpack.c.b16 %v598, %v597
        %v617 = vpack.c.b16 %v600, %v599
        %v618 = vpack.c.b16 %v602, %v601
        %635 = vmatpush.bf16.msra.mxu0 %v610
        %636 = vmatpush.bf16.msra.mxu0 %v609
        %637 = vmatpush.bf16.msra.mxu0 %v608
        %638 = vmatpush.bf16.msra.mxu0 %v607
        %639 = vmatpush.bf16.msra.mxu0 %v606
        %640 = vmatpush.bf16.msra.mxu0 %v605
        %641 = vmatpush.bf16.msra.mxu0 %v604
        %642 = vmatpush.bf16.msra.mxu0 %v603
        %643 = vmatmul.bf16.gmra.mxu0 %v507
        %v644 = vpop.f32.mrf.mxu0
        %v645 = vadd.f32 0.0, %v644
        %v646 = vpop.f32.mrf.mxu0
        %v647 = vadd.f32 0.0, %v646
        %648 = vmatmul.bf16.gmra.mxu0 %v509
        %v649 = vpop.f32.mrf.mxu0
        %v650 = vadd.f32 0.0, %v649
        %v651 = vpop.f32.mrf.mxu0
        %v652 = vadd.f32 0.0, %v651
        %653 = vmatmul.bf16.gmra.mxu0 %v511
        %v654 = vpop.f32.mrf.mxu0
        %v655 = vadd.f32 0.0, %v654
        %v656 = vpop.f32.mrf.mxu0
        %v657 = vadd.f32 0.0, %v656
        %658 = vmatmul.bf16.gmra.mxu0 %v513
        %v659 = vpop.f32.mrf.mxu0
        %v660 = vadd.f32 0.0, %v659
        %v661 = vpop.f32.mrf.mxu0
        %v662 = vadd.f32 0.0, %v661
        %663 = vmatmul.bf16.gmra.mxu0 %v515
        %v664 = vpop.f32.mrf.mxu0
        %v665 = vadd.f32 0.0, %v664
        %v666 = vpop.f32.mrf.mxu0
        %v667 = vadd.f32 0.0, %v666
        %668 = vmatmul.bf16.gmra.mxu0 %v517
        %v669 = vpop.f32.mrf.mxu0
        %v670 = vadd.f32 0.0, %v669
        %v671 = vpop.f32.mrf.mxu0
        %v672 = vadd.f32 0.0, %v671
        %673 = vmatmul.bf16.gmra.mxu0 %v519
        %v674 = vpop.f32.mrf.mxu0
        %v675 = vadd.f32 0.0, %v674
        %v676 = vpop.f32.mrf.mxu0
        %v677 = vadd.f32 0.0, %v676
        %678 = vmatmul.bf16.gmra.mxu0 %v521
        %v679 = vpop.f32.mrf.mxu0
        %v680 = vadd.f32 0.0, %v679
        %v681 = vpop.f32.mrf.mxu0
        %v682 = vadd.f32 0.0, %v681
        %683 = vdwg.mxu0
        %684 = vmatpush.bf16.msra.mxu0 %v618
        %685 = vmatpush.bf16.msra.mxu0 %v617
        %686 = vmatpush.bf16.msra.mxu0 %v616
        %687 = vmatpush.bf16.msra.mxu0 %v615
        %688 = vmatpush.bf16.msra.mxu0 %v614
        %689 = vmatpush.bf16.msra.mxu0 %v613
        %690 = vmatpush.bf16.msra.mxu0 %v612
        %691 = vmatpush.bf16.msra.mxu0 %v611
        %692 = vmatmul.bf16.gmra.mxu0 %v508
        %v693 = vpop.f32.mrf.mxu0
        %v694 = vadd.f32 %v645, %v693
        %v695 = vpop.f32.mrf.mxu0
        %v696 = vadd.f32 %v647, %v695
        %697 = vmatmul.bf16.gmra.mxu0 %v510
        %v698 = vpop.f32.mrf.mxu0
        %v699 = vadd.f32 %v650, %v698
        %v700 = vpop.f32.mrf.mxu0
        %v701 = vadd.f32 %v652, %v700
        %702 = vmatmul.bf16.gmra.mxu0 %v512
        %v703 = vpop.f32.mrf.mxu0
        %v704 = vadd.f32 %v655, %v703
        %v705 = vpop.f32.mrf.mxu0
        %v706 = vadd.f32 %v657, %v705
        %707 = vmatmul.bf16.gmra.mxu0 %v514
        %v708 = vpop.f32.mrf.mxu0
        %v709 = vadd.f32 %v660, %v708
        %v710 = vpop.f32.mrf.mxu0
        %v711 = vadd.f32 %v662, %v710
        %712 = vmatmul.bf16.gmra.mxu0 %v516
        %v713 = vpop.f32.mrf.mxu0
        %v714 = vadd.f32 %v665, %v713
        %v715 = vpop.f32.mrf.mxu0
        %v716 = vadd.f32 %v667, %v715
        %717 = vmatmul.bf16.gmra.mxu0 %v518
        %v718 = vpop.f32.mrf.mxu0
        %v719 = vadd.f32 %v670, %v718
        %v720 = vpop.f32.mrf.mxu0
        %v721 = vadd.f32 %v672, %v720
        %722 = vmatmul.bf16.gmra.mxu0 %v520
        %v723 = vpop.f32.mrf.mxu0
        %v724 = vadd.f32 %v675, %v723
        %v725 = vpop.f32.mrf.mxu0
        %v726 = vadd.f32 %v677, %v725
        %727 = vmatmul.bf16.gmra.mxu0 %v522
        %v728 = vpop.f32.mrf.mxu0
        %v729 = vadd.f32 %v680, %v728
        %v730 = vpop.f32.mrf.mxu0
        %v731 = vadd.f32 %v682, %v730
        %732 = vdwg.mxu0
        %v733 = vadd.f32 %v395, %v694
        %v734 = vadd.f32 %v396, %v696
        %v735 = vadd.f32 %v397, %v699
        %v736 = vadd.f32 %v398, %v701
        %v737 = vadd.f32 %v399, %v704
        %v738 = vadd.f32 %v400, %v706
        %v739 = vadd.f32 %v401, %v709
        %v740 = vadd.f32 %v402, %v711
        %v741 = vadd.f32 %v403, %v714
        %v742 = vadd.f32 %v404, %v716
        %v743 = vadd.f32 %v405, %v719
        %v744 = vadd.f32 %v406, %v721
        %v745 = vadd.f32 %v407, %v724
        %v746 = vadd.f32 %v408, %v726
        %v747 = vadd.f32 %v409, %v729
        %v748 = vadd.f32 %v410, %v731
        %749 = vst [vmem:[#allocation2] sm:$0xff] %v733
        %750 = vst [vmem:[#allocation2 + $0x8] sm:$0xff] %v734
        %751 = vst [vmem:[#allocation2 + $0x10] sm:$0xff] %v735
        %752 = vst [vmem:[#allocation2 + $0x18] sm:$0xff] %v736
        %753 = vst [vmem:[#allocation2 + $0x20] sm:$0xff] %v737
        %754 = vst [vmem:[#allocation2 + $0x28] sm:$0xff] %v738
        %755 = vst [vmem:[#allocation2 + $0x30] sm:$0xff] %v739
        %756 = vst [vmem:[#allocation2 + $0x38] sm:$0xff] %v740
        %757 = vst [vmem:[#allocation2 + $0x40] sm:$0xff] %v741
        %758 = vst [vmem:[#allocation2 + $0x48] sm:$0xff] %v742
        %759 = vst [vmem:[#allocation2 + $0x50] sm:$0xff] %v743
        %760 = vst [vmem:[#allocation2 + $0x58] sm:$0xff] %v744
        %761 = vst [vmem:[#allocation2 + $0x60] sm:$0xff] %v745
        %762 = vst [vmem:[#allocation2 + $0x68] sm:$0xff] %v746
        %763 = vst [vmem:[#allocation2 + $0x70] sm:$0xff] %v747
        %764 = vst [vmem:[#allocation2 + $0x78] sm:$0xff] %v748
        // Predicated region
        $region69: #{tpu_custom_call.1} parent=47 // pred_check
          %p765 = pneg %p375
        $region70: #{tpu_custom_call.1} parent=47 // pred_check_branch
          %767 = sbr.rel (%p765) target = $region72
        $region71: #{tpu_custom_call.1} parent=47 // pred_region
          %v768 = vld [vmem:[#allocation2] sm:$0xff]
          %v769 = vld [vmem:[#allocation2 + $0x8] sm:$0xff]
          %v770 = vld [vmem:[#allocation2 + $0x10] sm:$0xff]
          %v771 = vld [vmem:[#allocation2 + $0x18] sm:$0xff]
          %v772 = vld [vmem:[#allocation2 + $0x20] sm:$0xff]
          %v773 = vld [vmem:[#allocation2 + $0x28] sm:$0xff]
          %v774 = vld [vmem:[#allocation2 + $0x30] sm:$0xff]
          %v775 = vld [vmem:[#allocation2 + $0x38] sm:$0xff]
          %v776 = vld [vmem:[#allocation2 + $0x40] sm:$0xff]
          %v777 = vld [vmem:[#allocation2 + $0x48] sm:$0xff]
          %v778 = vld [vmem:[#allocation2 + $0x50] sm:$0xff]
          %v779 = vld [vmem:[#allocation2 + $0x58] sm:$0xff]
          %v780 = vld [vmem:[#allocation2 + $0x60] sm:$0xff]
          %v781 = vld [vmem:[#allocation2 + $0x68] sm:$0xff]
          %v782 = vld [vmem:[#allocation2 + $0x70] sm:$0xff]
          %v783 = vld [vmem:[#allocation2 + $0x78] sm:$0xff]
          %v784 = vld [vmem:[%s2] sm:$0x1]
          %v786 = vperm.slane %v784, 0
          %v788 = vmul.f32 %v768, %v786
          %v789 = vmul.f32 %v769, %v786
          %v790 = vmul.f32 %v770, %v786
          %v791 = vmul.f32 %v771, %v786
          %v792 = vmul.f32 %v772, %v786
          %v793 = vmul.f32 %v773, %v786
          %v794 = vmul.f32 %v774, %v786
          %v795 = vmul.f32 %v775, %v786
          %v796 = vmul.f32 %v776, %v786
          %v797 = vmul.f32 %v777, %v786
          %v798 = vmul.f32 %v778, %v786
          %v799 = vmul.f32 %v779, %v786
          %v800 = vmul.f32 %v780, %v786
          %v801 = vmul.f32 %v781, %v786
          %v802 = vmul.f32 %v782, %v786
          %v803 = vmul.f32 %v783, %v786
          %v804 = vpack.c.bf16 %v789, %v788
          %v805 = vpack.c.bf16 %v791, %v790
          %v806 = vpack.c.bf16 %v793, %v792
          %v807 = vpack.c.bf16 %v795, %v794
          %v808 = vpack.c.bf16 %v797, %v796
          %v809 = vpack.c.bf16 %v799, %v798
          %v810 = vpack.c.bf16 %v801, %v800
          %v811 = vpack.c.bf16 %v803, %v802
          %v812 = vld [vmem:[#allocation8] sm:$0xf]
          %v813 = vld [vmem:[#allocation8 + $0x4] sm:$0xf]
          %v814 = vld [vmem:[#allocation8 + $0x8] sm:$0xf]
          %v815 = vld [vmem:[#allocation8 + $0xc] sm:$0xf]
          %v816 = vld [vmem:[#allocation8 + $0x10] sm:$0xf]
          %v817 = vld [vmem:[#allocation8 + $0x14] sm:$0xf]
          %v818 = vld [vmem:[#allocation8 + $0x18] sm:$0xf]
          %v819 = vld [vmem:[#allocation8 + $0x1c] sm:$0xf]
          %v820 = vld [vmem:[#allocation8 + $0x20] sm:$0xf]
          %v821 = vld [vmem:[#allocation8 + $0x24] sm:$0xf]
          %v822 = vld [vmem:[#allocation8 + $0x28] sm:$0xf]
          %v823 = vld [vmem:[#allocation8 + $0x2c] sm:$0xf]
          %v824 = vld [vmem:[#allocation8 + $0x30] sm:$0xf]
          %v825 = vld [vmem:[#allocation8 + $0x34] sm:$0xf]
          %v826 = vld [vmem:[#allocation8 + $0x38] sm:$0xf]
          %v827 = vld [vmem:[#allocation8 + $0x3c] sm:$0xf]
          %v828 = vld [vmem:[#allocation8 + $0x40] sm:$0xf]
          %v829 = vld [vmem:[#allocation8 + $0x44] sm:$0xf]
          %v830 = vld [vmem:[#allocation8 + $0x48] sm:$0xf]
          %v831 = vld [vmem:[#allocation8 + $0x4c] sm:$0xf]
          %v832 = vld [vmem:[#allocation8 + $0x50] sm:$0xf]
          %v833 = vld [vmem:[#allocation8 + $0x54] sm:$0xf]
          %v834 = vld [vmem:[#allocation8 + $0x58] sm:$0xf]
          %v835 = vld [vmem:[#allocation8 + $0x5c] sm:$0xf]
          %v836 = vld [vmem:[#allocation8 + $0x60] sm:$0xf]
          %v837 = vld [vmem:[#allocation8 + $0x64] sm:$0xf]
          %v838 = vld [vmem:[#allocation8 + $0x68] sm:$0xf]
          %v839 = vld [vmem:[#allocation8 + $0x6c] sm:$0xf]
          %v840 = vld [vmem:[#allocation8 + $0x70] sm:$0xf]
          %v841 = vld [vmem:[#allocation8 + $0x74] sm:$0xf]
          %v842 = vld [vmem:[#allocation8 + $0x78] sm:$0xf]
          %v843 = vld [vmem:[#allocation8 + $0x7c] sm:$0xf]
          %v844 = vld [vmem:[#allocation8 + $0x80] sm:$0xf]
          %v845 = vld [vmem:[#allocation8 + $0x84] sm:$0xf]
          %v846 = vld [vmem:[#allocation8 + $0x88] sm:$0xf]
          %v847 = vld [vmem:[#allocation8 + $0x8c] sm:$0xf]
          %v848 = vld [vmem:[#allocation8 + $0x90] sm:$0xf]
          %v849 = vld [vmem:[#allocation8 + $0x94] sm:$0xf]
          %v850 = vld [vmem:[#allocation8 + $0x98] sm:$0xf]
          %v851 = vld [vmem:[#allocation8 + $0x9c] sm:$0xf]
          %v852 = vld [vmem:[#allocation8 + $0xa0] sm:$0xf]
          %v853 = vld [vmem:[#allocation8 + $0xa4] sm:$0xf]
          %v854 = vld [vmem:[#allocation8 + $0xa8] sm:$0xf]
          %v855 = vld [vmem:[#allocation8 + $0xac] sm:$0xf]
          %v856 = vld [vmem:[#allocation8 + $0xb0] sm:$0xf]
          %v857 = vld [vmem:[#allocation8 + $0xb4] sm:$0xf]
          %v858 = vld [vmem:[#allocation8 + $0xb8] sm:$0xf]
          %v859 = vld [vmem:[#allocation8 + $0xbc] sm:$0xf]
          %v860 = vld [vmem:[#allocation8 + $0xc0] sm:$0xf]
          %v861 = vld [vmem:[#allocation8 + $0xc4] sm:$0xf]
          %v862 = vld [vmem:[#allocation8 + $0xc8] sm:$0xf]
          %v863 = vld [vmem:[#allocation8 + $0xcc] sm:$0xf]
          %v864 = vld [vmem:[#allocation8 + $0xd0] sm:$0xf]
          %v865 = vld [vmem:[#allocation8 + $0xd4] sm:$0xf]
          %v866 = vld [vmem:[#allocation8 + $0xd8] sm:$0xf]
          %v867 = vld [vmem:[#allocation8 + $0xdc] sm:$0xf]
          %v868 = vld [vmem:[#allocation8 + $0xe0] sm:$0xf]
          %v869 = vld [vmem:[#allocation8 + $0xe4] sm:$0xf]
          %v870 = vld [vmem:[#allocation8 + $0xe8] sm:$0xf]
          %v871 = vld [vmem:[#allocation8 + $0xec] sm:$0xf]
          %v872 = vld [vmem:[#allocation8 + $0xf0] sm:$0xf]
          %v873 = vld [vmem:[#allocation8 + $0xf4] sm:$0xf]
          %v874 = vld [vmem:[#allocation8 + $0xf8] sm:$0xf]
          %v875 = vld [vmem:[#allocation8 + $0xfc] sm:$0xf]
          %v876 = vld [vmem:[%s4] sm:$0xff]
          %v877 = vld [vmem:[%s4 + $0x8] sm:$0xff]
          %v878 = vld [vmem:[%s4 + $0x10] sm:$0xff]
          %v879 = vld [vmem:[%s4 + $0x18] sm:$0xff]
          %v880 = vld [vmem:[%s4 + $0x20] sm:$0xff]
          %v881 = vld [vmem:[%s4 + $0x28] sm:$0xff]
          %v882 = vld [vmem:[%s4 + $0x30] sm:$0xff]
          %v883 = vld [vmem:[%s4 + $0x38] sm:$0xff]
          %v884 = vld [vmem:[%s4 + $0x40] sm:$0xff]
          %v885 = vld [vmem:[%s4 + $0x48] sm:$0xff]
          %v886 = vld [vmem:[%s4 + $0x50] sm:$0xff]
          %v887 = vld [vmem:[%s4 + $0x58] sm:$0xff]
          %v888 = vld [vmem:[%s4 + $0x60] sm:$0xff]
          %v889 = vld [vmem:[%s4 + $0x68] sm:$0xff]
          %v890 = vld [vmem:[%s4 + $0x70] sm:$0xff]
          %v891 = vld [vmem:[%s4 + $0x78] sm:$0xff]
          %v892 = vld [vmem:[%s4 + $0x80] sm:$0xff]
          %v893 = vld [vmem:[%s4 + $0x88] sm:$0xff]
          %v894 = vld [vmem:[%s4 + $0x90] sm:$0xff]
          %v895 = vld [vmem:[%s4 + $0x98] sm:$0xff]
          %v896 = vld [vmem:[%s4 + $0xa0] sm:$0xff]
          %v897 = vld [vmem:[%s4 + $0xa8] sm:$0xff]
          %v898 = vld [vmem:[%s4 + $0xb0] sm:$0xff]
          %v899 = vld [vmem:[%s4 + $0xb8] sm:$0xff]
          %v900 = vld [vmem:[%s4 + $0xc0] sm:$0xff]
          %v901 = vld [vmem:[%s4 + $0xc8] sm:$0xff]
          %v902 = vld [vmem:[%s4 + $0xd0] sm:$0xff]
          %v903 = vld [vmem:[%s4 + $0xd8] sm:$0xff]
          %v904 = vld [vmem:[%s4 + $0xe0] sm:$0xff]
          %v905 = vld [vmem:[%s4 + $0xe8] sm:$0xff]
          %v906 = vld [vmem:[%s4 + $0xf0] sm:$0xff]
          %v907 = vld [vmem:[%s4 + $0xf8] sm:$0xff]
          %v908 = vld [vmem:[%s4 + $0x100] sm:$0xff]
          %v909 = vld [vmem:[%s4 + $0x108] sm:$0xff]
          %v910 = vld [vmem:[%s4 + $0x110] sm:$0xff]
          %v911 = vld [vmem:[%s4 + $0x118] sm:$0xff]
          %v912 = vld [vmem:[%s4 + $0x120] sm:$0xff]
          %v913 = vld [vmem:[%s4 + $0x128] sm:$0xff]
          %v914 = vld [vmem:[%s4 + $0x130] sm:$0xff]
          %v915 = vld [vmem:[%s4 + $0x138] sm:$0xff]
          %v916 = vld [vmem:[%s4 + $0x140] sm:$0xff]
          %v917 = vld [vmem:[%s4 + $0x148] sm:$0xff]
          %v918 = vld [vmem:[%s4 + $0x150] sm:$0xff]
          %v919 = vld [vmem:[%s4 + $0x158] sm:$0xff]
          %v920 = vld [vmem:[%s4 + $0x160] sm:$0xff]
          %v921 = vld [vmem:[%s4 + $0x168] sm:$0xff]
          %v922 = vld [vmem:[%s4 + $0x170] sm:$0xff]
          %v923 = vld [vmem:[%s4 + $0x178] sm:$0xff]
          %v924 = vld [vmem:[%s4 + $0x180] sm:$0xff]
          %v925 = vld [vmem:[%s4 + $0x188] sm:$0xff]
          %v926 = vld [vmem:[%s4 + $0x190] sm:$0xff]
          %v927 = vld [vmem:[%s4 + $0x198] sm:$0xff]
          %v928 = vld [vmem:[%s4 + $0x1a0] sm:$0xff]
          %v929 = vld [vmem:[%s4 + $0x1a8] sm:$0xff]
          %v930 = vld [vmem:[%s4 + $0x1b0] sm:$0xff]
          %v931 = vld [vmem:[%s4 + $0x1b8] sm:$0xff]
          %v932 = vld [vmem:[%s4 + $0x1c0] sm:$0xff]
          %v933 = vld [vmem:[%s4 + $0x1c8] sm:$0xff]
          %v934 = vld [vmem:[%s4 + $0x1d0] sm:$0xff]
          %v935 = vld [vmem:[%s4 + $0x1d8] sm:$0xff]
          %v936 = vld [vmem:[%s4 + $0x1e0] sm:$0xff]
          %v937 = vld [vmem:[%s4 + $0x1e8] sm:$0xff]
          %v938 = vld [vmem:[%s4 + $0x1f0] sm:$0xff]
          %v939 = vld [vmem:[%s4 + $0x1f8] sm:$0xff]
          %941 = vset.pattern.permute.xlu0 0
          %942 = vperm.xlu0 %941, %v876
          %v943 = vpop.permute.xlu0 %942
          %946 = vset.pattern.permute.xlu0 0
          %947 = vperm.xlu0 %946, %v877
          %v948 = vpop.permute.xlu0 %947
          %951 = vset.pattern.permute.xlu0 0
          %952 = vperm.xlu0 %951, %v878
          %v953 = vpop.permute.xlu0 %952
          %956 = vset.pattern.permute.xlu0 0
          %957 = vperm.xlu0 %956, %v879
          %v958 = vpop.permute.xlu0 %957
          %961 = vset.pattern.permute.xlu0 0
          %962 = vperm.xlu0 %961, %v880
          %v963 = vpop.permute.xlu0 %962
          %966 = vset.pattern.permute.xlu0 0
          %967 = vperm.xlu0 %966, %v881
          %v968 = vpop.permute.xlu0 %967
          %971 = vset.pattern.permute.xlu0 0
          %972 = vperm.xlu0 %971, %v882
          %v973 = vpop.permute.xlu0 %972
          %976 = vset.pattern.permute.xlu0 0
          %977 = vperm.xlu0 %976, %v883
          %v978 = vpop.permute.xlu0 %977
          %981 = vset.pattern.permute.xlu0 0
          %982 = vperm.xlu0 %981, %v884
          %v983 = vpop.permute.xlu0 %982
          %986 = vset.pattern.permute.xlu0 0
          %987 = vperm.xlu0 %986, %v885
          %v988 = vpop.permute.xlu0 %987
          %991 = vset.pattern.permute.xlu0 0
          %992 = vperm.xlu0 %991, %v886
          %v993 = vpop.permute.xlu0 %992
          %996 = vset.pattern.permute.xlu0 0
          %997 = vperm.xlu0 %996, %v887
          %v998 = vpop.permute.xlu0 %997
          %1001 = vset.pattern.permute.xlu0 0
          %1002 = vperm.xlu0 %1001, %v888
          %v1003 = vpop.permute.xlu0 %1002
          %1006 = vset.pattern.permute.xlu0 0
          %1007 = vperm.xlu0 %1006, %v889
          %v1008 = vpop.permute.xlu0 %1007
          %1011 = vset.pattern.permute.xlu0 0
          %1012 = vperm.xlu0 %1011, %v890
          %v1013 = vpop.permute.xlu0 %1012
          %1016 = vset.pattern.permute.xlu0 0
          %1017 = vperm.xlu0 %1016, %v891
          %v1018 = vpop.permute.xlu0 %1017
          %1021 = vset.pattern.permute.xlu0 0
          %1022 = vperm.xlu0 %1021, %v892
          %v1023 = vpop.permute.xlu0 %1022
          %1026 = vset.pattern.permute.xlu0 0
          %1027 = vperm.xlu0 %1026, %v893
          %v1028 = vpop.permute.xlu0 %1027
          %1031 = vset.pattern.permute.xlu0 0
          %1032 = vperm.xlu0 %1031, %v894
          %v1033 = vpop.permute.xlu0 %1032
          %1036 = vset.pattern.permute.xlu0 0
          %1037 = vperm.xlu0 %1036, %v895
          %v1038 = vpop.permute.xlu0 %1037
          %1041 = vset.pattern.permute.xlu0 0
          %1042 = vperm.xlu0 %1041, %v896
          %v1043 = vpop.permute.xlu0 %1042
          %1046 = vset.pattern.permute.xlu0 0
          %1047 = vperm.xlu0 %1046, %v897
          %v1048 = vpop.permute.xlu0 %1047
          %1051 = vset.pattern.permute.xlu0 0
          %1052 = vperm.xlu0 %1051, %v898
          %v1053 = vpop.permute.xlu0 %1052
          %1056 = vset.pattern.permute.xlu0 0
          %1057 = vperm.xlu0 %1056, %v899
          %v1058 = vpop.permute.xlu0 %1057
          %1061 = vset.pattern.permute.xlu0 0
          %1062 = vperm.xlu0 %1061, %v900
          %v1063 = vpop.permute.xlu0 %1062
          %1066 = vset.pattern.permute.xlu0 0
          %1067 = vperm.xlu0 %1066, %v901
          %v1068 = vpop.permute.xlu0 %1067
          %1071 = vset.pattern.permute.xlu0 0
          %1072 = vperm.xlu0 %1071, %v902
          %v1073 = vpop.permute.xlu0 %1072
          %1076 = vset.pattern.permute.xlu0 0
          %1077 = vperm.xlu0 %1076, %v903
          %v1078 = vpop.permute.xlu0 %1077
          %1081 = vset.pattern.permute.xlu0 0
          %1082 = vperm.xlu0 %1081, %v904
          %v1083 = vpop.permute.xlu0 %1082
          %1086 = vset.pattern.permute.xlu0 0
          %1087 = vperm.xlu0 %1086, %v905
          %v1088 = vpop.permute.xlu0 %1087
          %1091 = vset.pattern.permute.xlu0 0
          %1092 = vperm.xlu0 %1091, %v906
          %v1093 = vpop.permute.xlu0 %1092
          %1096 = vset.pattern.permute.xlu0 0
          %1097 = vperm.xlu0 %1096, %v907
          %v1098 = vpop.permute.xlu0 %1097
          %1101 = vset.pattern.permute.xlu0 0
          %1102 = vperm.xlu0 %1101, %v908
          %v1103 = vpop.permute.xlu0 %1102
          %1106 = vset.pattern.permute.xlu0 0
          %1107 = vperm.xlu0 %1106, %v909
          %v1108 = vpop.permute.xlu0 %1107
          %1111 = vset.pattern.permute.xlu0 0
          %1112 = vperm.xlu0 %1111, %v910
          %v1113 = vpop.permute.xlu0 %1112
          %1116 = vset.pattern.permute.xlu0 0
          %1117 = vperm.xlu0 %1116, %v911
          %v1118 = vpop.permute.xlu0 %1117
          %1121 = vset.pattern.permute.xlu0 0
          %1122 = vperm.xlu0 %1121, %v912
          %v1123 = vpop.permute.xlu0 %1122
          %1126 = vset.pattern.permute.xlu0 0
          %1127 = vperm.xlu0 %1126, %v913
          %v1128 = vpop.permute.xlu0 %1127
          %1131 = vset.pattern.permute.xlu0 0
          %1132 = vperm.xlu0 %1131, %v914
          %v1133 = vpop.permute.xlu0 %1132
          %1136 = vset.pattern.permute.xlu0 0
          %1137 = vperm.xlu0 %1136, %v915
          %v1138 = vpop.permute.xlu0 %1137
          %1141 = vset.pattern.permute.xlu0 0
          %1142 = vperm.xlu0 %1141, %v916
          %v1143 = vpop.permute.xlu0 %1142
          %1146 = vset.pattern.permute.xlu0 0
          %1147 = vperm.xlu0 %1146, %v917
          %v1148 = vpop.permute.xlu0 %1147
          %1151 = vset.pattern.permute.xlu0 0
          %1152 = vperm.xlu0 %1151, %v918
          %v1153 = vpop.permute.xlu0 %1152
          %1156 = vset.pattern.permute.xlu0 0
          %1157 = vperm.xlu0 %1156, %v919
          %v1158 = vpop.permute.xlu0 %1157
          %1161 = vset.pattern.permute.xlu0 0
          %1162 = vperm.xlu0 %1161, %v920
          %v1163 = vpop.permute.xlu0 %1162
          %1166 = vset.pattern.permute.xlu0 0
          %1167 = vperm.xlu0 %1166, %v921
          %v1168 = vpop.permute.xlu0 %1167
          %1171 = vset.pattern.permute.xlu0 0
          %1172 = vperm.xlu0 %1171, %v922
          %v1173 = vpop.permute.xlu0 %1172
          %1176 = vset.pattern.permute.xlu0 0
          %1177 = vperm.xlu0 %1176, %v923
          %v1178 = vpop.permute.xlu0 %1177
          %1181 = vset.pattern.permute.xlu0 0
          %1182 = vperm.xlu0 %1181, %v924
          %v1183 = vpop.permute.xlu0 %1182
          %1186 = vset.pattern.permute.xlu0 0
          %1187 = vperm.xlu0 %1186, %v925
          %v1188 = vpop.permute.xlu0 %1187
          %1191 = vset.pattern.permute.xlu0 0
          %1192 = vperm.xlu0 %1191, %v926
          %v1193 = vpop.permute.xlu0 %1192
          %1196 = vset.pattern.permute.xlu0 0
          %1197 = vperm.xlu0 %1196, %v927
          %v1198 = vpop.permute.xlu0 %1197
          %1201 = vset.pattern.permute.xlu0 0
          %1202 = vperm.xlu0 %1201, %v928
          %v1203 = vpop.permute.xlu0 %1202
          %1206 = vset.pattern.permute.xlu0 0
          %1207 = vperm.xlu0 %1206, %v929
          %v1208 = vpop.permute.xlu0 %1207
          %1211 = vset.pattern.permute.xlu0 0
          %1212 = vperm.xlu0 %1211, %v930
          %v1213 = vpop.permute.xlu0 %1212
          %1216 = vset.pattern.permute.xlu0 0
          %1217 = vperm.xlu0 %1216, %v931
          %v1218 = vpop.permute.xlu0 %1217
          %1221 = vset.pattern.permute.xlu0 0
          %1222 = vperm.xlu0 %1221, %v932
          %v1223 = vpop.permute.xlu0 %1222
          %1226 = vset.pattern.permute.xlu0 0
          %1227 = vperm.xlu0 %1226, %v933
          %v1228 = vpop.permute.xlu0 %1227
          %1231 = vset.pattern.permute.xlu0 0
          %1232 = vperm.xlu0 %1231, %v934
          %v1233 = vpop.permute.xlu0 %1232
          %1236 = vset.pattern.permute.xlu0 0
          %1237 = vperm.xlu0 %1236, %v935
          %v1238 = vpop.permute.xlu0 %1237
          %1241 = vset.pattern.permute.xlu0 0
          %1242 = vperm.xlu0 %1241, %v936
          %v1243 = vpop.permute.xlu0 %1242
          %1246 = vset.pattern.permute.xlu0 0
          %1247 = vperm.xlu0 %1246, %v937
          %v1248 = vpop.permute.xlu0 %1247
          %1251 = vset.pattern.permute.xlu0 0
          %1252 = vperm.xlu0 %1251, %v938
          %v1253 = vpop.permute.xlu0 %1252
          %1256 = vset.pattern.permute.xlu0 0
          %1257 = vperm.xlu0 %1256, %v939
          %v1258 = vpop.permute.xlu0 %1257
          %v1324 = vunpack.c.l.b16 %v812
          %v1325 = vunpack.c.l.b16 %v813
          %v1326 = vunpack.c.l.b16 %v814
          %v1327 = vunpack.c.l.b16 %v815
          %v1328 = vunpack.c.l.b16 %v816
          %v1329 = vunpack.c.l.b16 %v817
          %v1330 = vunpack.c.l.b16 %v818
          %v1331 = vunpack.c.l.b16 %v819
          %v1332 = vunpack.c.l.b16 %v820
          %v1333 = vunpack.c.l.b16 %v821
          %v1334 = vunpack.c.l.b16 %v822
          %v1335 = vunpack.c.l.b16 %v823
          %v1336 = vunpack.c.l.b16 %v824
          %v1337 = vunpack.c.l.b16 %v825
          %v1338 = vunpack.c.l.b16 %v826
          %v1339 = vunpack.c.l.b16 %v827
          %v1340 = vunpack.c.l.b16 %v828
          %v1341 = vunpack.c.l.b16 %v829
          %v1342 = vunpack.c.l.b16 %v830
          %v1343 = vunpack.c.l.b16 %v831
          %v1344 = vunpack.c.l.b16 %v832
          %v1345 = vunpack.c.l.b16 %v833
          %v1346 = vunpack.c.l.b16 %v834
          %v1347 = vunpack.c.l.b16 %v835
          %v1348 = vunpack.c.l.b16 %v836
          %v1349 = vunpack.c.l.b16 %v837
          %v1350 = vunpack.c.l.b16 %v838
          %v1351 = vunpack.c.l.b16 %v839
          %v1352 = vunpack.c.l.b16 %v840
          %v1353 = vunpack.c.l.b16 %v841
          %v1354 = vunpack.c.l.b16 %v842
          %v1355 = vunpack.c.l.b16 %v843
          %v1356 = vunpack.c.l.b16 %v844
          %v1357 = vunpack.c.l.b16 %v845
          %v1358 = vunpack.c.l.b16 %v846
          %v1359 = vunpack.c.l.b16 %v847
          %v1360 = vunpack.c.l.b16 %v848
          %v1361 = vunpack.c.l.b16 %v849
          %v1362 = vunpack.c.l.b16 %v850
          %v1363 = vunpack.c.l.b16 %v851
          %v1364 = vunpack.c.l.b16 %v852
          %v1365 = vunpack.c.l.b16 %v853
          %v1366 = vunpack.c.l.b16 %v854
          %v1367 = vunpack.c.l.b16 %v855
          %v1368 = vunpack.c.l.b16 %v856
          %v1369 = vunpack.c.l.b16 %v857
          %v1370 = vunpack.c.l.b16 %v858
          %v1371 = vunpack.c.l.b16 %v859
          %v1372 = vunpack.c.l.b16 %v860
          %v1373 = vunpack.c.l.b16 %v861
          %v1374 = vunpack.c.l.b16 %v862
          %v1375 = vunpack.c.l.b16 %v863
          %v1376 = vunpack.c.l.b16 %v864
          %v1377 = vunpack.c.l.b16 %v865
          %v1378 = vunpack.c.l.b16 %v866
          %v1379 = vunpack.c.l.b16 %v867
          %v1380 = vunpack.c.l.b16 %v868
          %v1381 = vunpack.c.l.b16 %v869
          %v1382 = vunpack.c.l.b16 %v870
          %v1383 = vunpack.c.l.b16 %v871
          %v1384 = vunpack.c.l.b16 %v872
          %v1385 = vunpack.c.l.b16 %v873
          %v1386 = vunpack.c.l.b16 %v874
          %v1387 = vunpack.c.l.b16 %v875
          %v1388 = vpack.c.b16 %v1325, %v1324
          %v1389 = vpack.c.b16 %v1327, %v1326
          %v1390 = vpack.c.b16 %v1329, %v1328
          %v1391 = vpack.c.b16 %v1331, %v1330
          %v1392 = vpack.c.b16 %v1333, %v1332
          %v1393 = vpack.c.b16 %v1335, %v1334
          %v1394 = vpack.c.b16 %v1337, %v1336
          %v1395 = vpack.c.b16 %v1339, %v1338
          %v1396 = vpack.c.b16 %v1341, %v1340
          %v1397 = vpack.c.b16 %v1343, %v1342
          %v1398 = vpack.c.b16 %v1345, %v1344
          %v1399 = vpack.c.b16 %v1347, %v1346
          %v1400 = vpack.c.b16 %v1349, %v1348
          %v1401 = vpack.c.b16 %v1351, %v1350
          %v1402 = vpack.c.b16 %v1353, %v1352
          %v1403 = vpack.c.b16 %v1355, %v1354
          %v1404 = vpack.c.b16 %v1357, %v1356
          %v1405 = vpack.c.b16 %v1359, %v1358
          %v1406 = vpack.c.b16 %v1361, %v1360
          %v1407 = vpack.c.b16 %v1363, %v1362
          %v1408 = vpack.c.b16 %v1365, %v1364
          %v1409 = vpack.c.b16 %v1367, %v1366
          %v1410 = vpack.c.b16 %v1369, %v1368
          %v1411 = vpack.c.b16 %v1371, %v1370
          %v1412 = vpack.c.b16 %v1373, %v1372
          %v1413 = vpack.c.b16 %v1375, %v1374
          %v1414 = vpack.c.b16 %v1377, %v1376
          %v1415 = vpack.c.b16 %v1379, %v1378
          %v1416 = vpack.c.b16 %v1381, %v1380
          %v1417 = vpack.c.b16 %v1383, %v1382
          %v1418 = vpack.c.b16 %v1385, %v1384
          %v1419 = vpack.c.b16 %v1387, %v1386
          %1452 = vmatpush.bf16.msra.mxu0 %v811
          %1453 = vmatpush.bf16.msra.mxu0 %v810
          %1454 = vmatpush.bf16.msra.mxu0 %v809
          %1455 = vmatpush.bf16.msra.mxu0 %v808
          %1456 = vmatpush.bf16.msra.mxu0 %v807
          %1457 = vmatpush.bf16.msra.mxu0 %v806
          %1458 = vmatpush.bf16.msra.mxu0 %v805
          %1459 = vmatpush.bf16.msra.mxu0 %v804
          %1460 = vmatmul.bf16.gmra.mxu0 %v1388
          %v1461 = vpop.f32.mrf.mxu0
          %v1462 = vadd.f32 %v943, %v1461
          %v1463 = vpop.f32.mrf.mxu0
          %v1464 = vadd.f32 %v948, %v1463
          %1465 = vmatmul.bf16.gmra.mxu0 %v1389
          %v1466 = vpop.f32.mrf.mxu0
          %v1467 = vadd.f32 %v953, %v1466
          %v1468 = vpop.f32.mrf.mxu0
          %v1469 = vadd.f32 %v958, %v1468
          %1470 = vmatmul.bf16.gmra.mxu0 %v1390
          %v1471 = vpop.f32.mrf.mxu0
          %v1472 = vadd.f32 %v963, %v1471
          %v1473 = vpop.f32.mrf.mxu0
          %v1474 = vadd.f32 %v968, %v1473
          %1475 = vmatmul.bf16.gmra.mxu0 %v1391
          %v1476 = vpop.f32.mrf.mxu0
          %v1477 = vadd.f32 %v973, %v1476
          %v1478 = vpop.f32.mrf.mxu0
          %v1479 = vadd.f32 %v978, %v1478
          %1480 = vmatmul.bf16.gmra.mxu0 %v1392
          %v1481 = vpop.f32.mrf.mxu0
          %v1482 = vadd.f32 %v983, %v1481
          %v1483 = vpop.f32.mrf.mxu0
          %v1484 = vadd.f32 %v988, %v1483
          %1485 = vmatmul.bf16.gmra.mxu0 %v1393
          %v1486 = vpop.f32.mrf.mxu0
          %v1487 = vadd.f32 %v993, %v1486
          %v1488 = vpop.f32.mrf.mxu0
          %v1489 = vadd.f32 %v998, %v1488
          %1490 = vmatmul.bf16.gmra.mxu0 %v1394
          %v1491 = vpop.f32.mrf.mxu0
          %v1492 = vadd.f32 %v1003, %v1491
          %v1493 = vpop.f32.mrf.mxu0
          %v1494 = vadd.f32 %v1008, %v1493
          %1495 = vmatmul.bf16.gmra.mxu0 %v1395
          %v1496 = vpop.f32.mrf.mxu0
          %v1497 = vadd.f32 %v1013, %v1496
          %v1498 = vpop.f32.mrf.mxu0
          %v1499 = vadd.f32 %v1018, %v1498
          %1500 = vmatmul.bf16.gmra.mxu0 %v1396
          %v1501 = vpop.f32.mrf.mxu0
          %v1502 = vadd.f32 %v1023, %v1501
          %v1503 = vpop.f32.mrf.mxu0
          %v1504 = vadd.f32 %v1028, %v1503
          %1505 = vmatmul.bf16.gmra.mxu0 %v1397
          %v1506 = vpop.f32.mrf.mxu0
          %v1507 = vadd.f32 %v1033, %v1506
          %v1508 = vpop.f32.mrf.mxu0
          %v1509 = vadd.f32 %v1038, %v1508
          %1510 = vmatmul.bf16.gmra.mxu0 %v1398
          %v1511 = vpop.f32.mrf.mxu0
          %v1512 = vadd.f32 %v1043, %v1511
          %v1513 = vpop.f32.mrf.mxu0
          %v1514 = vadd.f32 %v1048, %v1513
          %1515 = vmatmul.bf16.gmra.mxu0 %v1399
          %v1516 = vpop.f32.mrf.mxu0
          %v1517 = vadd.f32 %v1053, %v1516
          %v1518 = vpop.f32.mrf.mxu0
          %v1519 = vadd.f32 %v1058, %v1518
          %1520 = vmatmul.bf16.gmra.mxu0 %v1400
          %v1521 = vpop.f32.mrf.mxu0
          %v1522 = vadd.f32 %v1063, %v1521
          %v1523 = vpop.f32.mrf.mxu0
          %v1524 = vadd.f32 %v1068, %v1523
          %1525 = vmatmul.bf16.gmra.mxu0 %v1401
          %v1526 = vpop.f32.mrf.mxu0
          %v1527 = vadd.f32 %v1073, %v1526
          %v1528 = vpop.f32.mrf.mxu0
          %v1529 = vadd.f32 %v1078, %v1528
          %1530 = vmatmul.bf16.gmra.mxu0 %v1402
          %v1531 = vpop.f32.mrf.mxu0
          %v1532 = vadd.f32 %v1083, %v1531
          %v1533 = vpop.f32.mrf.mxu0
          %v1534 = vadd.f32 %v1088, %v1533
          %1535 = vmatmul.bf16.gmra.mxu0 %v1403
          %v1536 = vpop.f32.mrf.mxu0
          %v1537 = vadd.f32 %v1093, %v1536
          %v1538 = vpop.f32.mrf.mxu0
          %v1539 = vadd.f32 %v1098, %v1538
          %1540 = vmatmul.bf16.gmra.mxu0 %v1404
          %v1541 = vpop.f32.mrf.mxu0
          %v1542 = vadd.f32 %v1103, %v1541
          %v1543 = vpop.f32.mrf.mxu0
          %v1544 = vadd.f32 %v1108, %v1543
          %1545 = vmatmul.bf16.gmra.mxu0 %v1405
          %v1546 = vpop.f32.mrf.mxu0
          %v1547 = vadd.f32 %v1113, %v1546
          %v1548 = vpop.f32.mrf.mxu0
          %v1549 = vadd.f32 %v1118, %v1548
          %1550 = vmatmul.bf16.gmra.mxu0 %v1406
          %v1551 = vpop.f32.mrf.mxu0
          %v1552 = vadd.f32 %v1123, %v1551
          %v1553 = vpop.f32.mrf.mxu0
          %v1554 = vadd.f32 %v1128, %v1553
          %1555 = vmatmul.bf16.gmra.mxu0 %v1407
          %v1556 = vpop.f32.mrf.mxu0
          %v1557 = vadd.f32 %v1133, %v1556
          %v1558 = vpop.f32.mrf.mxu0
          %v1559 = vadd.f32 %v1138, %v1558
          %1560 = vmatmul.bf16.gmra.mxu0 %v1408
          %v1561 = vpop.f32.mrf.mxu0
          %v1562 = vadd.f32 %v1143, %v1561
          %v1563 = vpop.f32.mrf.mxu0
          %v1564 = vadd.f32 %v1148, %v1563
          %1565 = vmatmul.bf16.gmra.mxu0 %v1409
          %v1566 = vpop.f32.mrf.mxu0
          %v1567 = vadd.f32 %v1153, %v1566
          %v1568 = vpop.f32.mrf.mxu0
          %v1569 = vadd.f32 %v1158, %v1568
          %1570 = vmatmul.bf16.gmra.mxu0 %v1410
          %v1571 = vpop.f32.mrf.mxu0
          %v1572 = vadd.f32 %v1163, %v1571
          %v1573 = vpop.f32.mrf.mxu0
          %v1574 = vadd.f32 %v1168, %v1573
          %1575 = vmatmul.bf16.gmra.mxu0 %v1411
          %v1576 = vpop.f32.mrf.mxu0
          %v1577 = vadd.f32 %v1173, %v1576
          %v1578 = vpop.f32.mrf.mxu0
          %v1579 = vadd.f32 %v1178, %v1578
          %1580 = vmatmul.bf16.gmra.mxu0 %v1412
          %v1581 = vpop.f32.mrf.mxu0
          %v1582 = vadd.f32 %v1183, %v1581
          %v1583 = vpop.f32.mrf.mxu0
          %v1584 = vadd.f32 %v1188, %v1583
          %1585 = vmatmul.bf16.gmra.mxu0 %v1413
          %v1586 = vpop.f32.mrf.mxu0
          %v1587 = vadd.f32 %v1193, %v1586
          %v1588 = vpop.f32.mrf.mxu0
          %v1589 = vadd.f32 %v1198, %v1588
          %1590 = vmatmul.bf16.gmra.mxu0 %v1414
          %v1591 = vpop.f32.mrf.mxu0
          %v1592 = vadd.f32 %v1203, %v1591
          %v1593 = vpop.f32.mrf.mxu0
          %v1594 = vadd.f32 %v1208, %v1593
          %1595 = vmatmul.bf16.gmra.mxu0 %v1415
          %v1596 = vpop.f32.mrf.mxu0
          %v1597 = vadd.f32 %v1213, %v1596
          %v1598 = vpop.f32.mrf.mxu0
          %v1599 = vadd.f32 %v1218, %v1598
          %1600 = vmatmul.bf16.gmra.mxu0 %v1416
          %v1601 = vpop.f32.mrf.mxu0
          %v1602 = vadd.f32 %v1223, %v1601
          %v1603 = vpop.f32.mrf.mxu0
          %v1604 = vadd.f32 %v1228, %v1603
          %1605 = vmatmul.bf16.gmra.mxu0 %v1417
          %v1606 = vpop.f32.mrf.mxu0
          %v1607 = vadd.f32 %v1233, %v1606
          %v1608 = vpop.f32.mrf.mxu0
          %v1609 = vadd.f32 %v1238, %v1608
          %1610 = vmatmul.bf16.gmra.mxu0 %v1418
          %v1611 = vpop.f32.mrf.mxu0
          %v1612 = vadd.f32 %v1243, %v1611
          %v1613 = vpop.f32.mrf.mxu0
          %v1614 = vadd.f32 %v1248, %v1613
          %1615 = vmatmul.bf16.gmra.mxu0 %v1419
          %v1616 = vpop.f32.mrf.mxu0
          %v1617 = vadd.f32 %v1253, %v1616
          %v1618 = vpop.f32.mrf.mxu0
          %v1619 = vadd.f32 %v1258, %v1618
          %1620 = vdwg.mxu0
          %v1621 = vmax.f32 %v1462, 0.0
          %v1622 = vmax.f32 %v1464, 0.0
          %v1623 = vmax.f32 %v1467, 0.0
          %v1624 = vmax.f32 %v1469, 0.0
          %v1625 = vmax.f32 %v1472, 0.0
          %v1626 = vmax.f32 %v1474, 0.0
          %v1627 = vmax.f32 %v1477, 0.0
          %v1628 = vmax.f32 %v1479, 0.0
          %v1629 = vmax.f32 %v1482, 0.0
          %v1630 = vmax.f32 %v1484, 0.0
          %v1631 = vmax.f32 %v1487, 0.0
          %v1632 = vmax.f32 %v1489, 0.0
          %v1633 = vmax.f32 %v1492, 0.0
          %v1634 = vmax.f32 %v1494, 0.0
          %v1635 = vmax.f32 %v1497, 0.0
          %v1636 = vmax.f32 %v1499, 0.0
          %v1637 = vmax.f32 %v1502, 0.0
          %v1638 = vmax.f32 %v1504, 0.0
          %v1639 = vmax.f32 %v1507, 0.0
          %v1640 = vmax.f32 %v1509, 0.0
          %v1641 = vmax.f32 %v1512, 0.0
          %v1642 = vmax.f32 %v1514, 0.0
          %v1643 = vmax.f32 %v1517, 0.0
          %v1644 = vmax.f32 %v1519, 0.0
          %v1645 = vmax.f32 %v1522, 0.0
          %v1646 = vmax.f32 %v1524, 0.0
          %v1647 = vmax.f32 %v1527, 0.0
          %v1648 = vmax.f32 %v1529, 0.0
          %v1649 = vmax.f32 %v1532, 0.0
          %v1650 = vmax.f32 %v1534, 0.0
          %v1651 = vmax.f32 %v1537, 0.0
          %v1652 = vmax.f32 %v1539, 0.0
          %v1653 = vmax.f32 %v1542, 0.0
          %v1654 = vmax.f32 %v1544, 0.0
          %v1655 = vmax.f32 %v1547, 0.0
          %v1656 = vmax.f32 %v1549, 0.0
          %v1657 = vmax.f32 %v1552, 0.0
          %v1658 = vmax.f32 %v1554, 0.0
          %v1659 = vmax.f32 %v1557, 0.0
          %v1660 = vmax.f32 %v1559, 0.0
          %v1661 = vmax.f32 %v1562, 0.0
          %v1662 = vmax.f32 %v1564, 0.0
          %v1663 = vmax.f32 %v1567, 0.0
          %v1664 = vmax.f32 %v1569, 0.0
          %v1665 = vmax.f32 %v1572, 0.0
          %v1666 = vmax.f32 %v1574, 0.0
          %v1667 = vmax.f32 %v1577, 0.0
          %v1668 = vmax.f32 %v1579, 0.0
          %v1669 = vmax.f32 %v1582, 0.0
          %v1670 = vmax.f32 %v1584, 0.0
          %v1671 = vmax.f32 %v1587, 0.0
          %v1672 = vmax.f32 %v1589, 0.0
          %v1673 = vmax.f32 %v1592, 0.0
          %v1674 = vmax.f32 %v1594, 0.0
          %v1675 = vmax.f32 %v1597, 0.0
          %v1676 = vmax.f32 %v1599, 0.0
          %v1677 = vmax.f32 %v1602, 0.0
          %v1678 = vmax.f32 %v1604, 0.0
          %v1679 = vmax.f32 %v1607, 0.0
          %v1680 = vmax.f32 %v1609, 0.0
          %v1681 = vmax.f32 %v1612, 0.0
          %v1682 = vmax.f32 %v1614, 0.0
          %v1683 = vmax.f32 %v1617, 0.0
          %v1684 = vmax.f32 %v1619, 0.0
          %v1685 = vld [vmem:[%s5] sm:$0xff]
          %v1686 = vld [vmem:[%s5 + $0x8] sm:$0xff]
          %v1687 = vld [vmem:[%s5 + $0x10] sm:$0xff]
          %v1688 = vld [vmem:[%s5 + $0x18] sm:$0xff]
          %v1689 = vld [vmem:[%s5 + $0x20] sm:$0xff]
          %v1690 = vld [vmem:[%s5 + $0x28] sm:$0xff]
          %v1691 = vld [vmem:[%s5 + $0x30] sm:$0xff]
          %v1692 = vld [vmem:[%s5 + $0x38] sm:$0xff]
          %v1693 = vld [vmem:[%s5 + $0x40] sm:$0xff]
          %v1694 = vld [vmem:[%s5 + $0x48] sm:$0xff]
          %v1695 = vld [vmem:[%s5 + $0x50] sm:$0xff]
          %v1696 = vld [vmem:[%s5 + $0x58] sm:$0xff]
          %v1697 = vld [vmem:[%s5 + $0x60] sm:$0xff]
          %v1698 = vld [vmem:[%s5 + $0x68] sm:$0xff]
          %v1699 = vld [vmem:[%s5 + $0x70] sm:$0xff]
          %v1700 = vld [vmem:[%s5 + $0x78] sm:$0xff]
          %v1701 = vld [vmem:[%s5 + $0x80] sm:$0xff]
          %v1702 = vld [vmem:[%s5 + $0x88] sm:$0xff]
          %v1703 = vld [vmem:[%s5 + $0x90] sm:$0xff]
          %v1704 = vld [vmem:[%s5 + $0x98] sm:$0xff]
          %v1705 = vld [vmem:[%s5 + $0xa0] sm:$0xff]
          %v1706 = vld [vmem:[%s5 + $0xa8] sm:$0xff]
          %v1707 = vld [vmem:[%s5 + $0xb0] sm:$0xff]
          %v1708 = vld [vmem:[%s5 + $0xb8] sm:$0xff]
          %v1709 = vld [vmem:[%s5 + $0xc0] sm:$0xff]
          %v1710 = vld [vmem:[%s5 + $0xc8] sm:$0xff]
          %v1711 = vld [vmem:[%s5 + $0xd0] sm:$0xff]
          %v1712 = vld [vmem:[%s5 + $0xd8] sm:$0xff]
          %v1713 = vld [vmem:[%s5 + $0xe0] sm:$0xff]
          %v1714 = vld [vmem:[%s5 + $0xe8] sm:$0xff]
          %v1715 = vld [vmem:[%s5 + $0xf0] sm:$0xff]
          %v1716 = vld [vmem:[%s5 + $0xf8] sm:$0xff]
          %v1717 = vld [vmem:[%s5 + $0x100] sm:$0xff]
          %v1718 = vld [vmem:[%s5 + $0x108] sm:$0xff]
          %v1719 = vld [vmem:[%s5 + $0x110] sm:$0xff]
          %v1720 = vld [vmem:[%s5 + $0x118] sm:$0xff]
          %v1721 = vld [vmem:[%s5 + $0x120] sm:$0xff]
          %v1722 = vld [vmem:[%s5 + $0x128] sm:$0xff]
          %v1723 = vld [vmem:[%s5 + $0x130] sm:$0xff]
          %v1724 = vld [vmem:[%s5 + $0x138] sm:$0xff]
          %v1725 = vld [vmem:[%s5 + $0x140] sm:$0xff]
          %v1726 = vld [vmem:[%s5 + $0x148] sm:$0xff]
          %v1727 = vld [vmem:[%s5 + $0x150] sm:$0xff]
          %v1728 = vld [vmem:[%s5 + $0x158] sm:$0xff]
          %v1729 = vld [vmem:[%s5 + $0x160] sm:$0xff]
          %v1730 = vld [vmem:[%s5 + $0x168] sm:$0xff]
          %v1731 = vld [vmem:[%s5 + $0x170] sm:$0xff]
          %v1732 = vld [vmem:[%s5 + $0x178] sm:$0xff]
          %v1733 = vld [vmem:[%s5 + $0x180] sm:$0xff]
          %v1734 = vld [vmem:[%s5 + $0x188] sm:$0xff]
          %v1735 = vld [vmem:[%s5 + $0x190] sm:$0xff]
          %v1736 = vld [vmem:[%s5 + $0x198] sm:$0xff]
          %v1737 = vld [vmem:[%s5 + $0x1a0] sm:$0xff]
          %v1738 = vld [vmem:[%s5 + $0x1a8] sm:$0xff]
          %v1739 = vld [vmem:[%s5 + $0x1b0] sm:$0xff]
          %v1740 = vld [vmem:[%s5 + $0x1b8] sm:$0xff]
          %v1741 = vld [vmem:[%s5 + $0x1c0] sm:$0xff]
          %v1742 = vld [vmem:[%s5 + $0x1c8] sm:$0xff]
          %v1743 = vld [vmem:[%s5 + $0x1d0] sm:$0xff]
          %v1744 = vld [vmem:[%s5 + $0x1d8] sm:$0xff]
          %v1745 = vld [vmem:[%s5 + $0x1e0] sm:$0xff]
          %v1746 = vld [vmem:[%s5 + $0x1e8] sm:$0xff]
          %v1747 = vld [vmem:[%s5 + $0x1f0] sm:$0xff]
          %v1748 = vld [vmem:[%s5 + $0x1f8] sm:$0xff]
          %v1749 = vmul.f32 %v1621, %v1685
          %v1750 = vmul.f32 %v1622, %v1686
          %v1751 = vmul.f32 %v1623, %v1687
          %v1752 = vmul.f32 %v1624, %v1688
          %v1753 = vmul.f32 %v1625, %v1689
          %v1754 = vmul.f32 %v1626, %v1690
          %v1755 = vmul.f32 %v1627, %v1691
          %v1756 = vmul.f32 %v1628, %v1692
          %v1757 = vmul.f32 %v1629, %v1693
          %v1758 = vmul.f32 %v1630, %v1694
          %v1759 = vmul.f32 %v1631, %v1695
          %v1760 = vmul.f32 %v1632, %v1696
          %v1761 = vmul.f32 %v1633, %v1697
          %v1762 = vmul.f32 %v1634, %v1698
          %v1763 = vmul.f32 %v1635, %v1699
          %v1764 = vmul.f32 %v1636, %v1700
          %v1765 = vmul.f32 %v1637, %v1701
          %v1766 = vmul.f32 %v1638, %v1702
          %v1767 = vmul.f32 %v1639, %v1703
          %v1768 = vmul.f32 %v1640, %v1704
          %v1769 = vmul.f32 %v1641, %v1705
          %v1770 = vmul.f32 %v1642, %v1706
          %v1771 = vmul.f32 %v1643, %v1707
          %v1772 = vmul.f32 %v1644, %v1708
          %v1773 = vmul.f32 %v1645, %v1709
          %v1774 = vmul.f32 %v1646, %v1710
          %v1775 = vmul.f32 %v1647, %v1711
          %v1776 = vmul.f32 %v1648, %v1712
          %v1777 = vmul.f32 %v1649, %v1713
          %v1778 = vmul.f32 %v1650, %v1714
          %v1779 = vmul.f32 %v1651, %v1715
          %v1780 = vmul.f32 %v1652, %v1716
          %v1781 = vmul.f32 %v1653, %v1717
          %v1782 = vmul.f32 %v1654, %v1718
          %v1783 = vmul.f32 %v1655, %v1719
          %v1784 = vmul.f32 %v1656, %v1720
          %v1785 = vmul.f32 %v1657, %v1721
          %v1786 = vmul.f32 %v1658, %v1722
          %v1787 = vmul.f32 %v1659, %v1723
          %v1788 = vmul.f32 %v1660, %v1724
          %v1789 = vmul.f32 %v1661, %v1725
          %v1790 = vmul.f32 %v1662, %v1726
          %v1791 = vmul.f32 %v1663, %v1727
          %v1792 = vmul.f32 %v1664, %v1728
          %v1793 = vmul.f32 %v1665, %v1729
          %v1794 = vmul.f32 %v1666, %v1730
          %v1795 = vmul.f32 %v1667, %v1731
          %v1796 = vmul.f32 %v1668, %v1732
          %v1797 = vmul.f32 %v1669, %v1733
          %v1798 = vmul.f32 %v1670, %v1734
          %v1799 = vmul.f32 %v1671, %v1735
          %v1800 = vmul.f32 %v1672, %v1736
          %v1801 = vmul.f32 %v1673, %v1737
          %v1802 = vmul.f32 %v1674, %v1738
          %v1803 = vmul.f32 %v1675, %v1739
          %v1804 = vmul.f32 %v1676, %v1740
          %v1805 = vmul.f32 %v1677, %v1741
          %v1806 = vmul.f32 %v1678, %v1742
          %v1807 = vmul.f32 %v1679, %v1743
          %v1808 = vmul.f32 %v1680, %v1744
          %v1809 = vmul.f32 %v1681, %v1745
          %v1810 = vmul.f32 %v1682, %v1746
          %v1811 = vmul.f32 %v1683, %v1747
          %v1812 = vmul.f32 %v1684, %v1748
          %v1813 = vpack.c.bf16 %v1750, %v1749
          %v1814 = vpack.c.bf16 %v1752, %v1751
          %v1815 = vpack.c.bf16 %v1754, %v1753
          %v1816 = vpack.c.bf16 %v1756, %v1755
          %v1817 = vpack.c.bf16 %v1758, %v1757
          %v1818 = vpack.c.bf16 %v1760, %v1759
          %v1819 = vpack.c.bf16 %v1762, %v1761
          %v1820 = vpack.c.bf16 %v1764, %v1763
          %v1821 = vpack.c.bf16 %v1766, %v1765
          %v1822 = vpack.c.bf16 %v1768, %v1767
          %v1823 = vpack.c.bf16 %v1770, %v1769
          %v1824 = vpack.c.bf16 %v1772, %v1771
          %v1825 = vpack.c.bf16 %v1774, %v1773
          %v1826 = vpack.c.bf16 %v1776, %v1775
          %v1827 = vpack.c.bf16 %v1778, %v1777
          %v1828 = vpack.c.bf16 %v1780, %v1779
          %v1829 = vpack.c.bf16 %v1782, %v1781
          %v1830 = vpack.c.bf16 %v1784, %v1783
          %v1831 = vpack.c.bf16 %v1786, %v1785
          %v1832 = vpack.c.bf16 %v1788, %v1787
          %v1833 = vpack.c.bf16 %v1790, %v1789
          %v1834 = vpack.c.bf16 %v1792, %v1791
          %v1835 = vpack.c.bf16 %v1794, %v1793
          %v1836 = vpack.c.bf16 %v1796, %v1795
          %v1837 = vpack.c.bf16 %v1798, %v1797
          %v1838 = vpack.c.bf16 %v1800, %v1799
          %v1839 = vpack.c.bf16 %v1802, %v1801
          %v1840 = vpack.c.bf16 %v1804, %v1803
          %v1841 = vpack.c.bf16 %v1806, %v1805
          %v1842 = vpack.c.bf16 %v1808, %v1807
          %v1843 = vpack.c.bf16 %v1810, %v1809
          %v1844 = vpack.c.bf16 %v1812, %v1811
          %v1845 = vld [vmem:[#allocation9] sm:$0xff]
          %v1846 = vld [vmem:[#allocation9 + $0x8] sm:$0xff]
          %v1847 = vld [vmem:[#allocation9 + $0x10] sm:$0xff]
          %v1848 = vld [vmem:[#allocation9 + $0x18] sm:$0xff]
          %v1849 = vld [vmem:[#allocation9 + $0x20] sm:$0xff]
          %v1850 = vld [vmem:[#allocation9 + $0x28] sm:$0xff]
          %v1851 = vld [vmem:[#allocation9 + $0x30] sm:$0xff]
          %v1852 = vld [vmem:[#allocation9 + $0x38] sm:$0xff]
          %v1853 = vld [vmem:[#allocation9 + $0x40] sm:$0xff]
          %v1854 = vld [vmem:[#allocation9 + $0x48] sm:$0xff]
          %v1855 = vld [vmem:[#allocation9 + $0x50] sm:$0xff]
          %v1856 = vld [vmem:[#allocation9 + $0x58] sm:$0xff]
          %v1857 = vld [vmem:[#allocation9 + $0x60] sm:$0xff]
          %v1858 = vld [vmem:[#allocation9 + $0x68] sm:$0xff]
          %v1859 = vld [vmem:[#allocation9 + $0x70] sm:$0xff]
          %v1860 = vld [vmem:[#allocation9 + $0x78] sm:$0xff]
          %v1861 = vld [vmem:[#allocation9 + $0x80] sm:$0xff]
          %v1862 = vld [vmem:[#allocation9 + $0x88] sm:$0xff]
          %v1863 = vld [vmem:[#allocation9 + $0x90] sm:$0xff]
          %v1864 = vld [vmem:[#allocation9 + $0x98] sm:$0xff]
          %v1865 = vld [vmem:[#allocation9 + $0xa0] sm:$0xff]
          %v1866 = vld [vmem:[#allocation9 + $0xa8] sm:$0xff]
          %v1867 = vld [vmem:[#allocation9 + $0xb0] sm:$0xff]
          %v1868 = vld [vmem:[#allocation9 + $0xb8] sm:$0xff]
          %v1869 = vld [vmem:[#allocation9 + $0xc0] sm:$0xff]
          %v1870 = vld [vmem:[#allocation9 + $0xc8] sm:$0xff]
          %v1871 = vld [vmem:[#allocation9 + $0xd0] sm:$0xff]
          %v1872 = vld [vmem:[#allocation9 + $0xd8] sm:$0xff]
          %v1873 = vld [vmem:[#allocation9 + $0xe0] sm:$0xff]
          %v1874 = vld [vmem:[#allocation9 + $0xe8] sm:$0xff]
          %v1875 = vld [vmem:[#allocation9 + $0xf0] sm:$0xff]
          %v1876 = vld [vmem:[#allocation9 + $0xf8] sm:$0xff]
          %v1909 = vunpack.c.l.b16 %v1845
          %v1910 = vunpack.c.h.b16 %v1845
          %v1911 = vunpack.c.l.b16 %v1846
          %v1912 = vunpack.c.h.b16 %v1846
          %v1913 = vunpack.c.l.b16 %v1847
          %v1914 = vunpack.c.h.b16 %v1847
          %v1915 = vunpack.c.l.b16 %v1848
          %v1916 = vunpack.c.h.b16 %v1848
          %v1917 = vunpack.c.l.b16 %v1849
          %v1918 = vunpack.c.h.b16 %v1849
          %v1919 = vunpack.c.l.b16 %v1850
          %v1920 = vunpack.c.h.b16 %v1850
          %v1921 = vunpack.c.l.b16 %v1851
          %v1922 = vunpack.c.h.b16 %v1851
          %v1923 = vunpack.c.l.b16 %v1852
          %v1924 = vunpack.c.h.b16 %v1852
          %v1925 = vunpack.c.l.b16 %v1853
          %v1926 = vunpack.c.h.b16 %v1853
          %v1927 = vunpack.c.l.b16 %v1854
          %v1928 = vunpack.c.h.b16 %v1854
          %v1929 = vunpack.c.l.b16 %v1855
          %v1930 = vunpack.c.h.b16 %v1855
          %v1931 = vunpack.c.l.b16 %v1856
          %v1932 = vunpack.c.h.b16 %v1856
          %v1933 = vunpack.c.l.b16 %v1857
          %v1934 = vunpack.c.h.b16 %v1857
          %v1935 = vunpack.c.l.b16 %v1858
          %v1936 = vunpack.c.h.b16 %v1858
          %v1937 = vunpack.c.l.b16 %v1859
          %v1938 = vunpack.c.h.b16 %v1859
          %v1939 = vunpack.c.l.b16 %v1860
          %v1940 = vunpack.c.h.b16 %v1860
          %v1941 = vunpack.c.l.b16 %v1861
          %v1942 = vunpack.c.h.b16 %v1861
          %v1943 = vunpack.c.l.b16 %v1862
          %v1944 = vunpack.c.h.b16 %v1862
          %v1945 = vunpack.c.l.b16 %v1863
          %v1946 = vunpack.c.h.b16 %v1863
          %v1947 = vunpack.c.l.b16 %v1864
          %v1948 = vunpack.c.h.b16 %v1864
          %v1949 = vunpack.c.l.b16 %v1865
          %v1950 = vunpack.c.h.b16 %v1865
          %v1951 = vunpack.c.l.b16 %v1866
          %v1952 = vunpack.c.h.b16 %v1866
          %v1953 = vunpack.c.l.b16 %v1867
          %v1954 = vunpack.c.h.b16 %v1867
          %v1955 = vunpack.c.l.b16 %v1868
          %v1956 = vunpack.c.h.b16 %v1868
          %v1957 = vunpack.c.l.b16 %v1869
          %v1958 = vunpack.c.h.b16 %v1869
          %v1959 = vunpack.c.l.b16 %v1870
          %v1960 = vunpack.c.h.b16 %v1870
          %v1961 = vunpack.c.l.b16 %v1871
          %v1962 = vunpack.c.h.b16 %v1871
          %v1963 = vunpack.c.l.b16 %v1872
          %v1964 = vunpack.c.h.b16 %v1872
          %v1965 = vunpack.c.l.b16 %v1873
          %v1966 = vunpack.c.h.b16 %v1873
          %v1967 = vunpack.c.l.b16 %v1874
          %v1968 = vunpack.c.h.b16 %v1874
          %v1969 = vunpack.c.l.b16 %v1875
          %v1970 = vunpack.c.h.b16 %v1875
          %v1971 = vunpack.c.l.b16 %v1876
          %v1972 = vunpack.c.h.b16 %v1876
          %v1973 = vpack.c.b16 %v1913, %v1909
          %v1974 = vpack.c.b16 %v1914, %v1910
          %v1975 = vpack.c.b16 %v1915, %v1911
          %v1976 = vpack.c.b16 %v1916, %v1912
          %v1977 = vpack.c.b16 %v1921, %v1917
          %v1978 = vpack.c.b16 %v1922, %v1918
          %v1979 = vpack.c.b16 %v1923, %v1919
          %v1980 = vpack.c.b16 %v1924, %v1920
          %v1981 = vpack.c.b16 %v1929, %v1925
          %v1982 = vpack.c.b16 %v1930, %v1926
          %v1983 = vpack.c.b16 %v1931, %v1927
          %v1984 = vpack.c.b16 %v1932, %v1928
          %v1985 = vpack.c.b16 %v1937, %v1933
          %v1986 = vpack.c.b16 %v1938, %v1934
          %v1987 = vpack.c.b16 %v1939, %v1935
          %v1988 = vpack.c.b16 %v1940, %v1936
          %v1989 = vpack.c.b16 %v1945, %v1941
          %v1990 = vpack.c.b16 %v1946, %v1942
          %v1991 = vpack.c.b16 %v1947, %v1943
          %v1992 = vpack.c.b16 %v1948, %v1944
          %v1993 = vpack.c.b16 %v1953, %v1949
          %v1994 = vpack.c.b16 %v1954, %v1950
          %v1995 = vpack.c.b16 %v1955, %v1951
          %v1996 = vpack.c.b16 %v1956, %v1952
          %v1997 = vpack.c.b16 %v1961, %v1957
          %v1998 = vpack.c.b16 %v1962, %v1958
          %v1999 = vpack.c.b16 %v1963, %v1959
          %v2000 = vpack.c.b16 %v1964, %v1960
          %v2001 = vpack.c.b16 %v1969, %v1965
          %v2002 = vpack.c.b16 %v1970, %v1966
          %v2003 = vpack.c.b16 %v1971, %v1967
          %v2004 = vpack.c.b16 %v1972, %v1968
          %2037 = vmatpush.bf16.msra.mxu0 %v1820
          %2038 = vmatpush.bf16.msra.mxu0 %v1819
          %2039 = vmatpush.bf16.msra.mxu0 %v1818
          %2040 = vmatpush.bf16.msra.mxu0 %v1817
          %2041 = vmatpush.bf16.msra.mxu0 %v1816
          %2042 = vmatpush.bf16.msra.mxu0 %v1815
          %2043 = vmatpush.bf16.msra.mxu0 %v1814
          %2044 = vmatpush.bf16.msra.mxu0 %v1813
          %2045 = vmatmul.bf16.gmra.mxu0 %v1973
          %v2046 = vpop.f32.mrf.mxu0
          %v2047 = vadd.f32 0.0, %v2046
          %v2048 = vpop.f32.mrf.mxu0
          %v2049 = vadd.f32 0.0, %v2048
          %2050 = vmatmul.bf16.gmra.mxu0 %v1977
          %v2051 = vpop.f32.mrf.mxu0
          %v2052 = vadd.f32 0.0, %v2051
          %v2053 = vpop.f32.mrf.mxu0
          %v2054 = vadd.f32 0.0, %v2053
          %2055 = vmatmul.bf16.gmra.mxu0 %v1981
          %v2056 = vpop.f32.mrf.mxu0
          %v2057 = vadd.f32 0.0, %v2056
          %v2058 = vpop.f32.mrf.mxu0
          %v2059 = vadd.f32 0.0, %v2058
          %2060 = vmatmul.bf16.gmra.mxu0 %v1985
          %v2061 = vpop.f32.mrf.mxu0
          %v2062 = vadd.f32 0.0, %v2061
          %v2063 = vpop.f32.mrf.mxu0
          %v2064 = vadd.f32 0.0, %v2063
          %2065 = vmatmul.bf16.gmra.mxu0 %v1989
          %v2066 = vpop.f32.mrf.mxu0
          %v2067 = vadd.f32 0.0, %v2066
          %v2068 = vpop.f32.mrf.mxu0
          %v2069 = vadd.f32 0.0, %v2068
          %2070 = vmatmul.bf16.gmra.mxu0 %v1993
          %v2071 = vpop.f32.mrf.mxu0
          %v2072 = vadd.f32 0.0, %v2071
          %v2073 = vpop.f32.mrf.mxu0
          %v2074 = vadd.f32 0.0, %v2073
          %2075 = vmatmul.bf16.gmra.mxu0 %v1997
          %v2076 = vpop.f32.mrf.mxu0
          %v2077 = vadd.f32 0.0, %v2076
          %v2078 = vpop.f32.mrf.mxu0
          %v2079 = vadd.f32 0.0, %v2078
          %2080 = vmatmul.bf16.gmra.mxu0 %v2001
          %v2081 = vpop.f32.mrf.mxu0
          %v2082 = vadd.f32 0.0, %v2081
          %v2083 = vpop.f32.mrf.mxu0
          %v2084 = vadd.f32 0.0, %v2083
          %2085 = vdwg.mxu0
          %2086 = vmatpush.bf16.msra.mxu0 %v1828
          %2087 = vmatpush.bf16.msra.mxu0 %v1827
          %2088 = vmatpush.bf16.msra.mxu0 %v1826
          %2089 = vmatpush.bf16.msra.mxu0 %v1825
          %2090 = vmatpush.bf16.msra.mxu0 %v1824
          %2091 = vmatpush.bf16.msra.mxu0 %v1823
          %2092 = vmatpush.bf16.msra.mxu0 %v1822
          %2093 = vmatpush.bf16.msra.mxu0 %v1821
          %2094 = vmatmul.bf16.gmra.mxu0 %v1974
          %v2095 = vpop.f32.mrf.mxu0
          %v2096 = vadd.f32 %v2047, %v2095
          %v2097 = vpop.f32.mrf.mxu0
          %v2098 = vadd.f32 %v2049, %v2097
          %2099 = vmatmul.bf16.gmra.mxu0 %v1978
          %v2100 = vpop.f32.mrf.mxu0
          %v2101 = vadd.f32 %v2052, %v2100
          %v2102 = vpop.f32.mrf.mxu0
          %v2103 = vadd.f32 %v2054, %v2102
          %2104 = vmatmul.bf16.gmra.mxu0 %v1982
          %v2105 = vpop.f32.mrf.mxu0
          %v2106 = vadd.f32 %v2057, %v2105
          %v2107 = vpop.f32.mrf.mxu0
          %v2108 = vadd.f32 %v2059, %v2107
          %2109 = vmatmul.bf16.gmra.mxu0 %v1986
          %v2110 = vpop.f32.mrf.mxu0
          %v2111 = vadd.f32 %v2062, %v2110
          %v2112 = vpop.f32.mrf.mxu0
          %v2113 = vadd.f32 %v2064, %v2112
          %2114 = vmatmul.bf16.gmra.mxu0 %v1990
          %v2115 = vpop.f32.mrf.mxu0
          %v2116 = vadd.f32 %v2067, %v2115
          %v2117 = vpop.f32.mrf.mxu0
          %v2118 = vadd.f32 %v2069, %v2117
          %2119 = vmatmul.bf16.gmra.mxu0 %v1994
          %v2120 = vpop.f32.mrf.mxu0
          %v2121 = vadd.f32 %v2072, %v2120
          %v2122 = vpop.f32.mrf.mxu0
          %v2123 = vadd.f32 %v2074, %v2122
          %2124 = vmatmul.bf16.gmra.mxu0 %v1998
          %v2125 = vpop.f32.mrf.mxu0
          %v2126 = vadd.f32 %v2077, %v2125
          %v2127 = vpop.f32.mrf.mxu0
          %v2128 = vadd.f32 %v2079, %v2127
          %2129 = vmatmul.bf16.gmra.mxu0 %v2002
          %v2130 = vpop.f32.mrf.mxu0
          %v2131 = vadd.f32 %v2082, %v2130
          %v2132 = vpop.f32.mrf.mxu0
          %v2133 = vadd.f32 %v2084, %v2132
          %2134 = vdwg.mxu0
          %2135 = vmatpush.bf16.msra.mxu0 %v1836
          %2136 = vmatpush.bf16.msra.mxu0 %v1835
          %2137 = vmatpush.bf16.msra.mxu0 %v1834
          %2138 = vmatpush.bf16.msra.mxu0 %v1833
          %2139 = vmatpush.bf16.msra.mxu0 %v1832
          %2140 = vmatpush.bf16.msra.mxu0 %v1831
          %2141 = vmatpush.bf16.msra.mxu0 %v1830
          %2142 = vmatpush.bf16.msra.mxu0 %v1829
          %2143 = vmatmul.bf16.gmra.mxu0 %v1975
          %v2144 = vpop.f32.mrf.mxu0
          %v2145 = vadd.f32 %v2096, %v2144
          %v2146 = vpop.f32.mrf.mxu0
          %v2147 = vadd.f32 %v2098, %v2146
          %2148 = vmatmul.bf16.gmra.mxu0 %v1979
          %v2149 = vpop.f32.mrf.mxu0
          %v2150 = vadd.f32 %v2101, %v2149
          %v2151 = vpop.f32.mrf.mxu0
          %v2152 = vadd.f32 %v2103, %v2151
          %2153 = vmatmul.bf16.gmra.mxu0 %v1983
          %v2154 = vpop.f32.mrf.mxu0
          %v2155 = vadd.f32 %v2106, %v2154
          %v2156 = vpop.f32.mrf.mxu0
          %v2157 = vadd.f32 %v2108, %v2156
          %2158 = vmatmul.bf16.gmra.mxu0 %v1987
          %v2159 = vpop.f32.mrf.mxu0
          %v2160 = vadd.f32 %v2111, %v2159
          %v2161 = vpop.f32.mrf.mxu0
          %v2162 = vadd.f32 %v2113, %v2161
          %2163 = vmatmul.bf16.gmra.mxu0 %v1991
          %v2164 = vpop.f32.mrf.mxu0
          %v2165 = vadd.f32 %v2116, %v2164
          %v2166 = vpop.f32.mrf.mxu0
          %v2167 = vadd.f32 %v2118, %v2166
          %2168 = vmatmul.bf16.gmra.mxu0 %v1995
          %v2169 = vpop.f32.mrf.mxu0
          %v2170 = vadd.f32 %v2121, %v2169
          %v2171 = vpop.f32.mrf.mxu0
          %v2172 = vadd.f32 %v2123, %v2171
          %2173 = vmatmul.bf16.gmra.mxu0 %v1999
          %v2174 = vpop.f32.mrf.mxu0
          %v2175 = vadd.f32 %v2126, %v2174
          %v2176 = vpop.f32.mrf.mxu0
          %v2177 = vadd.f32 %v2128, %v2176
          %2178 = vmatmul.bf16.gmra.mxu0 %v2003
          %v2179 = vpop.f32.mrf.mxu0
          %v2180 = vadd.f32 %v2131, %v2179
          %v2181 = vpop.f32.mrf.mxu0
          %v2182 = vadd.f32 %v2133, %v2181
          %2183 = vdwg.mxu0
          %2184 = vmatpush.bf16.msra.mxu0 %v1844
          %2185 = vmatpush.bf16.msra.mxu0 %v1843
          %2186 = vmatpush.bf16.msra.mxu0 %v1842
          %2187 = vmatpush.bf16.msra.mxu0 %v1841
          %2188 = vmatpush.bf16.msra.mxu0 %v1840
          %2189 = vmatpush.bf16.msra.mxu0 %v1839
          %2190 = vmatpush.bf16.msra.mxu0 %v1838
          %2191 = vmatpush.bf16.msra.mxu0 %v1837
          %2192 = vmatmul.bf16.gmra.mxu0 %v1976
          %v2193 = vpop.f32.mrf.mxu0
          %v2194 = vadd.f32 %v2145, %v2193
          %v2195 = vpop.f32.mrf.mxu0
          %v2196 = vadd.f32 %v2147, %v2195
          %2197 = vmatmul.bf16.gmra.mxu0 %v1980
          %v2198 = vpop.f32.mrf.mxu0
          %v2199 = vadd.f32 %v2150, %v2198
          %v2200 = vpop.f32.mrf.mxu0
          %v2201 = vadd.f32 %v2152, %v2200
          %2202 = vmatmul.bf16.gmra.mxu0 %v1984
          %v2203 = vpop.f32.mrf.mxu0
          %v2204 = vadd.f32 %v2155, %v2203
          %v2205 = vpop.f32.mrf.mxu0
          %v2206 = vadd.f32 %v2157, %v2205
          %2207 = vmatmul.bf16.gmra.mxu0 %v1988
          %v2208 = vpop.f32.mrf.mxu0
          %v2209 = vadd.f32 %v2160, %v2208
          %v2210 = vpop.f32.mrf.mxu0
          %v2211 = vadd.f32 %v2162, %v2210
          %2212 = vmatmul.bf16.gmra.mxu0 %v1992
          %v2213 = vpop.f32.mrf.mxu0
          %v2214 = vadd.f32 %v2165, %v2213
          %v2215 = vpop.f32.mrf.mxu0
          %v2216 = vadd.f32 %v2167, %v2215
          %2217 = vmatmul.bf16.gmra.mxu0 %v1996
          %v2218 = vpop.f32.mrf.mxu0
          %v2219 = vadd.f32 %v2170, %v2218
          %v2220 = vpop.f32.mrf.mxu0
          %v2221 = vadd.f32 %v2172, %v2220
          %2222 = vmatmul.bf16.gmra.mxu0 %v2000
          %v2223 = vpop.f32.mrf.mxu0
          %v2224 = vadd.f32 %v2175, %v2223
          %v2225 = vpop.f32.mrf.mxu0
          %v2226 = vadd.f32 %v2177, %v2225
          %2227 = vmatmul.bf16.gmra.mxu0 %v2004
          %v2228 = vpop.f32.mrf.mxu0
          %v2229 = vadd.f32 %v2180, %v2228
          %v2230 = vpop.f32.mrf.mxu0
          %v2231 = vadd.f32 %v2182, %v2230
          %2232 = vdwg.mxu0
          %v2233 = vpack.c.bf16 %v2194, %v2194
          %v2234 = vpack.c.bf16 %v2196, %v2196
          %v2235 = vpack.c.bf16 %v2199, %v2199
          %v2236 = vpack.c.bf16 %v2201, %v2201
          %v2237 = vpack.c.bf16 %v2204, %v2204
          %v2238 = vpack.c.bf16 %v2206, %v2206
          %v2239 = vpack.c.bf16 %v2209, %v2209
          %v2240 = vpack.c.bf16 %v2211, %v2211
          %v2241 = vpack.c.bf16 %v2214, %v2214
          %v2242 = vpack.c.bf16 %v2216, %v2216
          %v2243 = vpack.c.bf16 %v2219, %v2219
          %v2244 = vpack.c.bf16 %v2221, %v2221
          %v2245 = vpack.c.bf16 %v2224, %v2224
          %v2246 = vpack.c.bf16 %v2226, %v2226
          %v2247 = vpack.c.bf16 %v2229, %v2229
          %v2248 = vpack.c.bf16 %v2231, %v2231
          %2249 = vst [vmem:[%s372] sm:$0xf] %v2233
          %2250 = vst [vmem:[%s372 + $0x4] sm:$0xf] %v2234
          %2251 = vst [vmem:[%s372 + $0x8] sm:$0xf] %v2235
          %2252 = vst [vmem:[%s372 + $0xc] sm:$0xf] %v2236
          %2253 = vst [vmem:[%s372 + $0x10] sm:$0xf] %v2237
          %2254 = vst [vmem:[%s372 + $0x14] sm:$0xf] %v2238
          %2255 = vst [vmem:[%s372 + $0x18] sm:$0xf] %v2239
          %2256 = vst [vmem:[%s372 + $0x1c] sm:$0xf] %v2240
          %2257 = vst [vmem:[%s372 + $0x20] sm:$0xf] %v2241
          %2258 = vst [vmem:[%s372 + $0x24] sm:$0xf] %v2242
          %2259 = vst [vmem:[%s372 + $0x28] sm:$0xf] %v2243
          %2260 = vst [vmem:[%s372 + $0x2c] sm:$0xf] %v2244
          %2261 = vst [vmem:[%s372 + $0x30] sm:$0xf] %v2245
          %2262 = vst [vmem:[%s372 + $0x34] sm:$0xf] %v2246
          %2263 = vst [vmem:[%s372 + $0x38] sm:$0xf] %v2247
          %2264 = vst [vmem:[%s372 + $0x3c] sm:$0xf] %v2248
        $region72: #{tpu_custom_call.1} parent=47 // pred_fallthru
          _
        %s2265 = sand.u32 %s205, 1
        %s2266 = scalar_lea.sflag [#allocation5], %s2265
        %s2267 = sand.u32 %s205, 1
        %s2268 = smul.addr %s2267, 64
        %s2269 = scalar_lea.vmem [#allocation11], %s2268
        // Predicated region
        $region73: #{tpu_custom_call.1} parent=47 // pred_check
          %p2270 = pneg %p215
        $region74: #{tpu_custom_call.1} parent=47 // pred_check_branch
          %2272 = sbr.rel (%p2270) target = $region76
        $region75: #{tpu_custom_call.1} parent=47 // pred_region
          %2274 = vsyncadd %s2266, 0
          %s2275 = smul.addr %s30, 16
          %s2276 = smul.addr %s2275, 4
          %s2277 = scalar_lea.hbm %s7, %s2276
          %s2278 = sshll.u32 %s2269, 4
          %s2279 = int_to_ptr.vmem [resolvable:$true] %s2278
          %s2280 = sshll.u32 %s2277, 4
          %s2281 = int_to_ptr.hbm [resolvable:$true] %s2280
          %2286 = dma.vmem_to_hbm [thread:$0]  %s2279, 1024, %s2281, %s2266, 64, 64, 4
        $region76: #{tpu_custom_call.1} parent=47 // pred_fallthru
          _
      $region48: #{tpu_custom_call.1} parent=5 // pred_fallthru
        _
      %p2287 = scmp.le.s32.totalorder 2, %s21
      // Predicated region
      $region77: #{tpu_custom_call.1} parent=5 // pred_check
        %p2288 = pneg %p2287
      $region78: #{tpu_custom_call.1} parent=5 // pred_check_branch
        %2290 = sbr.rel (%p2288) target = $region80
      $region79: #{tpu_custom_call.1} parent=5 // pred_region
        %s2291 = ssub.s32 %s21, 2
        // Predicated region
        $region81: #{tpu_custom_call.1} parent=79 // pred_check
          %p2292 = pneg %p221
        $region82: #{tpu_custom_call.1} parent=79 // pred_check_branch
          %2294 = sbr.rel (%p2292) target = $region84
        $region83: #{tpu_custom_call.1} parent=79 // pred_region
          %s2295 = sand.u32 %s206, 1
          %s2296 = scalar_lea.sflag [#allocation5], %s2295
          %s2297 = sand.u32 %s206, 1
          %s2298 = smul.addr %s2297, 64
          %s2299 = scalar_lea.vmem [#allocation11], %s2298
          %2301 = dma.done %s2296, 1024
        $region84: #{tpu_custom_call.1} parent=79 // pred_fallthru
          _
      $region80: #{tpu_custom_call.1} parent=5 // pred_fallthru
        _
    $region6: #{tpu_custom_call.1} parent=1 // loop_footer
      %s25 = sadd.s32 1, %s21
    $region7: #{tpu_custom_call.1} parent=1 // loop_footer_branch
      %20 = sbr.rel target = $region3
    $region8: #{tpu_custom_call.1} parent=1 // loop_exit
      _
    %2302 = vsyncpa [#allocation4], 1
    %s2303 = scalar_lea.sflag [#allocation4], 1
    %2304 = vsyncpa %s2303, 1
    %2305 = vsyncpa [#allocation7], 1
    %2306 = vsyncpa [#allocation10], 1
    %2307 = vsyncpa [#allocation5], 1
    %s2308 = scalar_lea.sflag [#allocation5], 1
    %2309 = vsyncpa %s2308, 1

</llo_original>
